<compile_context>
chip_gen: v7x
topology: tpu7x:2x2x1
jax: 0.10.0
libtpu: 0.0.40
codegen_flags: <defaults>
</compile_context>

<pallas_src>
import functools

import jax
import jax.numpy as jnp
import numpy as np
from jax.experimental import pallas as pl
from jax.experimental.pallas import tpu as pltpu


# ------------------------------ fused kernel ---------------------------------
def _fused_kernel(x_ref, w_enc_ref, b_enc_ref, pool_ref, w_dec_ref, b_dec_ref,
                  o_ref, *, H, W, C_IN, C_ENC, N_CLS):
    # x_ref block: (1, H+2, W+2, C_IN) uint8, zero-padded 1-px halo (raw pixel zeros).
    # Cast in VMEM + fused normalize: (x/255 - 0.449)/0.226 == x*scale + shift.
    scale = 1.0 / (255.0 * 0.226)
    shift = -0.449 / 0.226
    x = x_ref[0].astype(jnp.int32).astype(jnp.float32) * scale + shift   # (H+2, W+2, C_IN)

    # PyTorch pads the *normalized* tensor with zeros; the wrapper padded raw uint8 zeros,
    # so re-zero the 1-px border after the affine transform (one vector select).
    r = jax.lax.broadcasted_iota(jnp.int32, (H + 2, W + 2, C_IN), 0)
    c = jax.lax.broadcasted_iota(jnp.int32, (H + 2, W + 2, C_IN), 1)
    inside = (r >= 1) & (r <= H) & (c >= 1) & (c <= W)
    x = jnp.where(inside, x, 0.0)

    # im2col: build one (H*W, 9*C_IN) patch matrix -> single MXU matmul (K = 9*C_IN).
    xw = jnp.concatenate([x[:, dx:dx + W, :] for dx in range(3)], axis=-1)   # (H+2, W, 3*C_IN)
    patches = jnp.concatenate([xw[dy:dy + H] for dy in range(3)], axis=-1)   # (H, W, 9*C_IN)
    patches = patches.reshape(H * W, 9 * C_IN)

    h = jnp.dot(patches, w_enc_ref[...], preferred_element_type=jnp.float32)  # (H*W, C_ENC)
    h = jnp.maximum(h + b_enc_ref[...], 0.0)                                  # conv bias + ReLU

    # Decoder fused in: mean over H as a pooling matmul (1/H baked into pool_ref),
    # then the linear classifier head. Output last dim is 128 -> lane-dense stores.
    feat = jnp.dot(pool_ref[...], h, preferred_element_type=jnp.float32)      # (W, C_ENC)
    o_ref[0] = (jnp.dot(feat, w_dec_ref[...], preferred_element_type=jnp.float32)
                + b_dec_ref[...])                                             # (W, N_CLS)


# --------------------------------- wrapper -----------------------------------
def encoder_decoder_forward(x_u8, params):
    """x_u8: (N, C_IN, H, W) uint8 (PyTorch NCHW). Returns (N, W, N_CLS) f32 logits."""
    w_enc, b_enc, w_dec, b_dec = params
    N, C_IN, H, W = x_u8.shape
    C_ENC = w_enc.shape[-1]
    N_CLS = w_dec.shape[-1]

    # Layout plumbing only (input stays uint8 through the DMA):
    #  NCHW -> NHWC, zero-pad a 1-px halo so the kernel never touches a scratch pad buffer.
    x_pad = jnp.pad(jnp.transpose(x_u8, (0, 2, 3, 1)),
                    ((0, 0), (1, 1), (1, 1), (0, 0)))          # (N, H+2, W+2, C_IN) uint8

    # Conv weight flattened for im2col: rows ordered (dy, dx, c_in) row-major.
    w_flat = w_enc.reshape(9 * C_IN, C_ENC)

    # H-mean as a matmul: pool[w, h*W + w'] = 1/H if w' == w else 0 (folds the mean's 1/H).
    col = jax.lax.broadcasted_iota(jnp.int32, (W, H * W), 1) % W
    row = jax.lax.broadcasted_iota(jnp.int32, (W, H * W), 0)
    pool = jnp.where(col == row, 1.0 / H, 0.0).astype(jnp.float32)

    kernel = functools.partial(_fused_kernel, H=H, W=W, C_IN=C_IN,
                               C_ENC=C_ENC, N_CLS=N_CLS)
    out = pl.pallas_call(
        kernel,
        out_shape=jax.ShapeDtypeStruct((N, W, N_CLS), jnp.float32),
        grid_spec=pltpu.PrefetchScalarGridSpec(
            num_scalar_prefetch=0,
            grid=(N,),
            in_specs=[
                pl.BlockSpec((1, H + 2, W + 2, C_IN), lambda n: (n, 0, 0, 0)),
                pl.BlockSpec((9 * C_IN, C_ENC), lambda n: (0, 0)),
                pl.BlockSpec((1, C_ENC), lambda n: (0, 0)),
                pl.BlockSpec((W, H * W), lambda n: (0, 0)),
                pl.BlockSpec((C_ENC, N_CLS), lambda n: (0, 0)),
                pl.BlockSpec((1, N_CLS), lambda n: (0, 0)),
            ],
            out_specs=pl.BlockSpec((1, W, N_CLS), lambda n: (n, 0, 0)),
        ),
        # grid=(N,) parallel -> v7x's 2 TensorCores split the batch; single kernel launch.
        compiler_params=pltpu.CompilerParams(dimension_semantics=("parallel",)),
    )(x_pad, w_flat, b_enc, pool, w_dec, b_dec)

    # TODO(synk): deploy_mode argmax(-1) path not exercised (deploy_mode=False by default).
    return out


# ---------------------------- pure-JAX reference ------------------------------
def reference_forward(x_u8, params):
    w_enc, b_enc, w_dec, b_dec = params
    x = x_u8.astype(jnp.float32) / 255.0
    x = (x - 0.449) / 0.226                                    # NCHW
    w_oihw = jnp.transpose(w_enc, (3, 2, 0, 1))                # HWIO -> OIHW
    y = jax.lax.conv_general_dilated(
        x, w_oihw, window_strides=(1, 1), padding="SAME",
        dimension_numbers=("NCHW", "OIHW", "NCHW"))
    y = jnp.maximum(y + b_enc.reshape(1, -1, 1, 1), 0.0)       # (N, C_ENC, H, W)
    y = jnp.transpose(y, (0, 3, 1, 2))                         # (N, W, C_ENC, H)
    y = jnp.mean(y, axis=-1)                                   # (N, W, C_ENC)
    return jnp.dot(y, w_dec) + b_dec.reshape(1, 1, -1)


# ----------------------------------- main -------------------------------------
if __name__ == "__main__":
    N, C_IN, H, W = 2, 4, 16, 16
    C_ENC, N_CLS = 32, 128   # 128 classes -> lane-dense output stores

    key = jax.random.PRNGKey(0)
    k_x, k_we, k_be, k_wd, k_bd = jax.random.split(key, 5)

    x_u8 = jax.random.randint(k_x, (N, C_IN, H, W), 0, 256, dtype=jnp.int32).astype(jnp.uint8)

    w_enc = jax.random.normal(k_we, (3, 3, C_IN, C_ENC), jnp.float32) * 0.1
    b_enc = jax.random.normal(k_be, (1, C_ENC), jnp.float32) * 0.1
    w_dec = jax.random.normal(k_wd, (C_ENC, N_CLS), jnp.float32) * 0.1
    b_dec = jax.random.normal(k_bd, (1, N_CLS), jnp.float32) * 0.1
    params = (w_enc, b_enc, w_dec, b_dec)

    out = jax.block_until_ready(encoder_decoder_forward(x_u8, params))
    ref = jax.block_until_ready(reference_forward(x_u8, params))
    np.testing.assert_allclose(np.asarray(out), np.asarray(ref), rtol=1e-3, atol=1e-3)

    assert out.shape == (N, W, N_CLS) and out.dtype == jnp.float32
    print("KERNEL_OK")
</pallas_src>

<mosaic_0001>
module attributes {stable_mosaic.version = 11 : i64} {
  func.func @_fused_kernel(%arg0: i32, %arg1: memref<1x18x18x4xi8, #tpu.memory_space<vmem>>, %arg2: memref<36x32xf32, #tpu.memory_space<vmem>>, %arg3: memref<1x32xf32, #tpu.memory_space<vmem>>, %arg4: memref<16x256xf32, #tpu.memory_space<vmem>>, %arg5: memref<32x128xf32, #tpu.memory_space<vmem>>, %arg6: memref<1x128xf32, #tpu.memory_space<vmem>>, %arg7: memref<1x16x128xf32, #tpu.memory_space<vmem>>) attributes {dimension_semantics = [#tpu.dimension_semantics<parallel>], iteration_bounds = array<i64: 2>, scalar_prefetch = 0 : i64, scratch_operands = 0 : i64, tpu.core_type = #tpu.core_type<tc>, window_params = [{transform_indices = @transform_0, window_bounds = array<i64: 1, 18, 18, 4>}, {pipeline_mode = #tpu.pipeline_mode<synchronous>, transform_indices = @transform_1, window_bounds = array<i64: 36, 32>}, {pipeline_mode = #tpu.pipeline_mode<synchronous>, transform_indices = @transform_2, window_bounds = array<i64: 1, 32>}, {pipeline_mode = #tpu.pipeline_mode<synchronous>, transform_indices = @transform_3, window_bounds = array<i64: 16, 256>}, {pipeline_mode = #tpu.pipeline_mode<synchronous>, transform_indices = @transform_4, window_bounds = array<i64: 32, 128>}, {pipeline_mode = #tpu.pipeline_mode<synchronous>, transform_indices = @transform_5, window_bounds = array<i64: 1, 128>}, {transform_indices = @transform_6, window_bounds = array<i64: 1, 16, 128>}]} {
    %c0 = arith.constant 0 : index
    %c0_0 = arith.constant 0 : index
    %c0_1 = arith.constant 0 : index
    %c0_2 = arith.constant 0 : index
    %0 = vector.load %arg1[%c0, %c0_0, %c0_1, %c0_2] : memref<1x18x18x4xi8, #tpu.memory_space<vmem>>, vector<1x18x18x4xi8>
    %1 = vector.shape_cast %0 : vector<1x18x18x4xi8> to vector<18x18x4xi8>
    %2 = arith.extui %1 : vector<18x18x4xi8> to vector<18x18x4xi32>
    %3 = arith.sitofp %2 : vector<18x18x4xi32> to vector<18x18x4xf32>
    %cst = arith.constant 0.0173520744 : f32
    %4 = vector.broadcast %cst : f32 to vector<18x18x4xf32>
    %5 = arith.mulf %3, %4 : vector<18x18x4xf32>
    %cst_3 = arith.constant -1.98672569 : f32
    %6 = vector.broadcast %cst_3 : f32 to vector<18x18x4xf32>
    %7 = arith.addf %5, %6 : vector<18x18x4xf32>
    %8 = tpu.iota {dimensions = array<i32: 0>} : vector<18x18x4xi32>
    %9 = tpu.iota {dimensions = array<i32: 1>} : vector<18x18x4xi32>
    %c1_i32 = arith.constant 1 : i32
    %10 = vector.broadcast %c1_i32 : i32 to vector<18x18x4xi32>
    %11 = arith.cmpi sge, %8, %10 : vector<18x18x4xi32>
    %c16_i32 = arith.constant 16 : i32
    %12 = vector.broadcast %c16_i32 : i32 to vector<18x18x4xi32>
    %13 = arith.cmpi sle, %8, %12 : vector<18x18x4xi32>
    %14 = arith.andi %11, %13 : vector<18x18x4xi1>
    %c1_i32_4 = arith.constant 1 : i32
    %15 = vector.broadcast %c1_i32_4 : i32 to vector<18x18x4xi32>
    %16 = arith.cmpi sge, %9, %15 : vector<18x18x4xi32>
    %17 = arith.andi %14, %16 : vector<18x18x4xi1>
    %c16_i32_5 = arith.constant 16 : i32
    %18 = vector.broadcast %c16_i32_5 : i32 to vector<18x18x4xi32>
    %19 = arith.cmpi sle, %9, %18 : vector<18x18x4xi32>
    %20 = arith.andi %17, %19 : vector<18x18x4xi1>
    %cst_6 = arith.constant 0.000000e+00 : f32
    %21 = vector.broadcast %cst_6 : f32 to vector<18x18x4xf32>
    %22 = arith.select %20, %7, %21 : vector<18x18x4xi1>, vector<18x18x4xf32>
    %23 = vector.extract_strided_slice %22 {offsets = [0, 0, 0], sizes = [18, 16, 4], strides = [1, 1, 1]} : vector<18x18x4xf32> to vector<18x16x4xf32>
    %24 = vector.extract_strided_slice %22 {offsets = [0, 1, 0], sizes = [18, 16, 4], strides = [1, 1, 1]} : vector<18x18x4xf32> to vector<18x16x4xf32>
    %25 = vector.extract_strided_slice %22 {offsets = [0, 2, 0], sizes = [18, 16, 4], strides = [1, 1, 1]} : vector<18x18x4xf32> to vector<18x16x4xf32>
    %26 = tpu.concatenate %23, %24, %25 in 2 : vector<18x16x4xf32>, vector<18x16x4xf32>, vector<18x16x4xf32> -> vector<18x16x12xf32>
    %27 = vector.extract_strided_slice %26 {offsets = [0, 0, 0], sizes = [16, 16, 12], strides = [1, 1, 1]} : vector<18x16x12xf32> to vector<16x16x12xf32>
    %28 = vector.extract_strided_slice %26 {offsets = [1, 0, 0], sizes = [16, 16, 12], strides = [1, 1, 1]} : vector<18x16x12xf32> to vector<16x16x12xf32>
    %29 = vector.extract_strided_slice %26 {offsets = [2, 0, 0], sizes = [16, 16, 12], strides = [1, 1, 1]} : vector<18x16x12xf32> to vector<16x16x12xf32>
    %30 = tpu.concatenate %27, %28, %29 in 2 : vector<16x16x12xf32>, vector<16x16x12xf32>, vector<16x16x12xf32> -> vector<16x16x36xf32>
    %31 = vector.shape_cast %30 : vector<16x16x36xf32> to vector<256x36xf32>
    %c0_7 = arith.constant 0 : index
    %c0_8 = arith.constant 0 : index
    %32 = vector.load %arg2[%c0_7, %c0_8] : memref<36x32xf32, #tpu.memory_space<vmem>>, vector<36x32xf32>
    %cst_9 = arith.constant dense<0.000000e+00> : vector<256x32xf32>
    %33 = tpu.matmul %31, %32, %cst_9 {dimension_numbers = #tpu.dot_dimension_numbers<[1], [0], [0], [1], [0, 0, 1, 1], [], []>} : vector<256x36xf32>, vector<36x32xf32>, vector<256x32xf32> -> vector<256x32xf32>
    %c0_10 = arith.constant 0 : index
    %c0_11 = arith.constant 0 : index
    %34 = vector.load %arg3[%c0_10, %c0_11] : memref<1x32xf32, #tpu.memory_space<vmem>>, vector<1x32xf32>
    %35 = vector.broadcast %34 : vector<1x32xf32> to vector<256x32xf32>
    %36 = arith.addf %33, %35 : vector<256x32xf32>
    %cst_12 = arith.constant 0.000000e+00 : f32
    %37 = vector.broadcast %cst_12 : f32 to vector<256x32xf32>
    %38 = arith.maximumf %36, %37 : vector<256x32xf32>
    %c0_13 = arith.constant 0 : index
    %c0_14 = arith.constant 0 : index
    %39 = vector.load %arg4[%c0_13, %c0_14] : memref<16x256xf32, #tpu.memory_space<vmem>>, vector<16x256xf32>
    %cst_15 = arith.constant dense<0.000000e+00> : vector<16x32xf32>
    %40 = tpu.matmul %39, %38, %cst_15 {dimension_numbers = #tpu.dot_dimension_numbers<[1], [0], [0], [1], [0, 0, 1, 1], [], []>} : vector<16x256xf32>, vector<256x32xf32>, vector<16x32xf32> -> vector<16x32xf32>
    %c0_16 = arith.constant 0 : index
    %c0_17 = arith.constant 0 : index
    %41 = vector.load %arg5[%c0_16, %c0_17] : memref<32x128xf32, #tpu.memory_space<vmem>>, vector<32x128xf32>
    %cst_18 = arith.constant dense<0.000000e+00> : vector<16x128xf32>
    %42 = tpu.matmul %40, %41, %cst_18 {dimension_numbers = #tpu.dot_dimension_numbers<[1], [0], [0], [1], [0, 0, 1, 1], [], []>} : vector<16x32xf32>, vector<32x128xf32>, vector<16x128xf32> -> vector<16x128xf32>
    %c0_19 = arith.constant 0 : index
    %c0_20 = arith.constant 0 : index
    %43 = vector.load %arg6[%c0_19, %c0_20] : memref<1x128xf32, #tpu.memory_space<vmem>>, vector<1x128xf32>
    %44 = vector.broadcast %43 : vector<1x128xf32> to vector<16x128xf32>
    %45 = arith.addf %42, %44 : vector<16x128xf32>
    %c0_21 = arith.constant 0 : index
    %c0_22 = arith.constant 0 : index
    %c0_23 = arith.constant 0 : index
    %46 = vector.load %arg7[%c0_21, %c0_22, %c0_23] : memref<1x16x128xf32, #tpu.memory_space<vmem>>, vector<1x16x128xf32>
    %47 = vector.shape_cast %46 : vector<1x16x128xf32> to vector<16x128xf32>
    %48 = vector.shape_cast %45 : vector<16x128xf32> to vector<1x16x128xf32>
    tpu.vector_store %arg7[%c0_21, %c0_22, %c0_23], %48 {strides = array<i32>} : memref<1x16x128xf32, #tpu.memory_space<vmem>>, vector<1x16x128xf32>,
    return
  }
  func.func @transform_0(%arg0: i32) -> (i32, i32, i32, i32) {
    %c0_i32 = arith.constant 0 : i32
    %c0_i32_0 = arith.constant 0 : i32
    %c0_i32_1 = arith.constant 0 : i32
    %c0_i32_2 = arith.constant 0 : i32
    return %arg0, %c0_i32, %c0_i32_0, %c0_i32_1 : i32, i32, i32, i32
  }
  func.func @transform_1(%arg0: i32) -> (i32, i32) {
    %c0_i32 = arith.constant 0 : i32
    %c0_i32_0 = arith.constant 0 : i32
    %c0_i32_1 = arith.constant 0 : i32
    return %c0_i32, %c0_i32_0 : i32, i32
  }
  func.func @transform_2(%arg0: i32) -> (i32, i32) {
    %c0_i32 = arith.constant 0 : i32
    %c0_i32_0 = arith.constant 0 : i32
    %c0_i32_1 = arith.constant 0 : i32
    return %c0_i32, %c0_i32_0 : i32, i32
  }
  func.func @transform_3(%arg0: i32) -> (i32, i32) {
    %c0_i32 = arith.constant 0 : i32
    %c0_i32_0 = arith.constant 0 : i32
    %c0_i32_1 = arith.constant 0 : i32
    return %c0_i32, %c0_i32_0 : i32, i32
  }
  func.func @transform_4(%arg0: i32) -> (i32, i32) {
    %c0_i32 = arith.constant 0 : i32
    %c0_i32_0 = arith.constant 0 : i32
    %c0_i32_1 = arith.constant 0 : i32
    return %c0_i32, %c0_i32_0 : i32, i32
  }
  func.func @transform_5(%arg0: i32) -> (i32, i32) {
    %c0_i32 = arith.constant 0 : i32
    %c0_i32_0 = arith.constant 0 : i32
    %c0_i32_1 = arith.constant 0 : i32
    return %c0_i32, %c0_i32_0 : i32, i32
  }
  func.func @transform_6(%arg0: i32) -> (i32, i32, i32) {
    %c0_i32 = arith.constant 0 : i32
    %c0_i32_0 = arith.constant 0 : i32
    %c0_i32_1 = arith.constant 0 : i32
    return %arg0, %c0_i32, %c0_i32_0 : i32, i32, i32
  }
}

</mosaic_0001>

<llo_original>
// kernel: tpu_custom_call.1
$region0: #{tpu_custom_call.1}
  #allocation0 [shape = 'u32[]', space=smem, size = 0x4, offset = 0x4, fixed_abs, tag = 'smem constant byte address 0x4 - core index']
  #allocation1 [shape = 'u32[144,128]{1,0:T(1,128)}', space=vmem, size = 0x12000, scoped, tag = 'internal scratch']
  %s0 = inlined_call_operand.vmem [shape: u8[2,18,18,4], index: 0, kind: input, shape index: {}]
  %s1 = inlined_call_operand.vmem [shape: f32[36,32], index: 1, kind: input, shape index: {}]
  %s2 = inlined_call_operand.vmem [shape: f32[1,32], index: 2, kind: input, shape index: {}]
  %s3 = inlined_call_operand.vmem [shape: f32[16,256], index: 3, kind: input, shape index: {}]
  %s4 = inlined_call_operand.vmem [shape: f32[32,128], index: 4, kind: input, shape index: {}]
  %s5 = inlined_call_operand.vmem [shape: f32[1,128], index: 5, kind: input, shape index: {}]
  %s6 = inlined_call_operand.hbm [shape: f32[2,16,128], index: 6, kind: output, shape index: {}]
  %s7 = sld [smem:[#allocation0]]
  $region57: #{tpu_custom_call.1} parent=0
    _
  %s9 = ssub.s32 1, %s7
  %s10 = scalar_select 0, %s9, %s7
  $region1: #{tpu_custom_call.1} parent=0
    #allocation2 [shape = 'u8[16384]{0}', space=vmem, size = 0x4000, scoped, tag = 'output window, operand 0']
    #allocation3 [shape = 's32[2]{0}', space=sflag, size = 0x8, scoped, tag = 'scoped memory for tpu_custom_call.1']
    %11 = vsyncpa [#allocation3], 0
    %s12 = scalar_lea.sflag [#allocation3], 1
    %13 = vsyncpa %s12, 0
    loop: start=0, step=1, limit=4
    $region2: #{tpu_custom_call.1} parent=1 // loop_pre_header
      _
    $region3: #{tpu_custom_call.1} parent=1 // loop_header
      %s15 = sphi 0, %s19
      %p16 = scmp.ge.s32.totalorder %s15, 4
      %s25 = sphi 0, %s27
      %s28 = sphi 0, %s25
      %s29 = sphi 0, %s28
      %s45 = sphi 0, %s29
      %s49 = sphi 0, %s49
      %s51 = sphi 0, %s49
      %s52 = sphi 0, %s51
      %s66 = sphi 0, %s52
      %s70 = sphi 0, %s70
      %s72 = sphi 0, %s70
      %s73 = sphi 0, %s72
      %s87 = sphi 0, %s73
      %s91 = sphi 0, %s91
      %s93 = sphi 0, %s91
      %s94 = sphi 0, %s93
      %s108 = sphi 0, %s94
      %s112 = sphi 0, %s112
      %s114 = sphi 0, %s112
      %s115 = sphi 0, %s114
      %s129 = sphi 0, %s115
      %s133 = sphi 0, %s133
      %s135 = sphi 0, %s133
      %s136 = sphi 0, %s135
      %s150 = sphi 0, %s136
      %s156 = sphi 0, %s158
      %s159 = sphi 0, %s156
      %s160 = sphi 0, %s159
      %s176 = sphi 0, %s160
    $region4: #{tpu_custom_call.1} parent=1 // loop_header_branch
      %18 = sbr.rel (%p16) target = $region8
    $region5: #{tpu_custom_call.1} parent=1 // loop_body
      %s20 = ssub.s32 %s15, 1
      %s21 = ssub.s32 %s15, 2
      %s22 = sadd.s32 %s15, 1
      %s23 = ssub.s32 %s15, %s22
      %p24 = scmp.eq.s32.totalorder %s23, 0
      %s26 = sadd.s32 %s25, 1
      %s27 = scalar_select %p24, %s25, %s26
      %p30 = pneg %p24
      %p31 = scmp.eq.s32.totalorder %s15, 1
      %p32 = por %p30, %p31
      %p33 = scmp.ne.s32.totalorder %s25, %s28
      %p34 = scmp.eq.s32.totalorder %s15, 0
      %p35 = por %p33, %p34
      %p36 = scmp.ne.s32.totalorder %s25, %s28
      %p37 = scmp.eq.s32.totalorder %s20, 1
      %p38 = por %p36, %p37
      %p39 = scmp.ne.s32.totalorder %s28, %s29
      %p40 = scmp.eq.s32.totalorder %s20, 0
      %p41 = por %p39, %p40
      %p42 = scmp.ne.s32.totalorder %s28, %s29
      %p43 = scmp.eq.s32.totalorder %s21, 1
      %p44 = por %p42, %p43
      %p46 = scmp.ne.s32.totalorder %s29, %s45
      %p47 = scmp.eq.s32.totalorder %s21, 0
      %p48 = por %p46, %p47
      %s50 = sadd.s32 %s49, 1
      %p53 = scmp.eq.s32.totalorder %s15, 1
      %p54 = scmp.ne.s32.totalorder %s49, %s51
      %p55 = scmp.eq.s32.totalorder %s15, 0
      %p56 = por %p54, %p55
      %p57 = scmp.ne.s32.totalorder %s49, %s51
      %p58 = scmp.eq.s32.totalorder %s20, 1
      %p59 = por %p57, %p58
      %p60 = scmp.ne.s32.totalorder %s51, %s52
      %p61 = scmp.eq.s32.totalorder %s20, 0
      %p62 = por %p60, %p61
      %p63 = scmp.ne.s32.totalorder %s51, %s52
      %p64 = scmp.eq.s32.totalorder %s21, 1
      %p65 = por %p63, %p64
      %p67 = scmp.ne.s32.totalorder %s52, %s66
      %p68 = scmp.eq.s32.totalorder %s21, 0
      %p69 = por %p67, %p68
      %s71 = sadd.s32 %s70, 1
      %p74 = scmp.eq.s32.totalorder %s15, 1
      %p75 = scmp.ne.s32.totalorder %s70, %s72
      %p76 = scmp.eq.s32.totalorder %s15, 0
      %p77 = por %p75, %p76
      %p78 = scmp.ne.s32.totalorder %s70, %s72
      %p79 = scmp.eq.s32.totalorder %s20, 1
      %p80 = por %p78, %p79
      %p81 = scmp.ne.s32.totalorder %s72, %s73
      %p82 = scmp.eq.s32.totalorder %s20, 0
      %p83 = por %p81, %p82
      %p84 = scmp.ne.s32.totalorder %s72, %s73
      %p85 = scmp.eq.s32.totalorder %s21, 1
      %p86 = por %p84, %p85
      %p88 = scmp.ne.s32.totalorder %s73, %s87
      %p89 = scmp.eq.s32.totalorder %s21, 0
      %p90 = por %p88, %p89
      %s92 = sadd.s32 %s91, 1
      %p95 = scmp.eq.s32.totalorder %s15, 1
      %p96 = scmp.ne.s32.totalorder %s91, %s93
      %p97 = scmp.eq.s32.totalorder %s15, 0
      %p98 = por %p96, %p97
      %p99 = scmp.ne.s32.totalorder %s91, %s93
      %p100 = scmp.eq.s32.totalorder %s20, 1
      %p101 = por %p99, %p100
      %p102 = scmp.ne.s32.totalorder %s93, %s94
      %p103 = scmp.eq.s32.totalorder %s20, 0
      %p104 = por %p102, %p103
      %p105 = scmp.ne.s32.totalorder %s93, %s94
      %p106 = scmp.eq.s32.totalorder %s21, 1
      %p107 = por %p105, %p106
      %p109 = scmp.ne.s32.totalorder %s94, %s108
      %p110 = scmp.eq.s32.totalorder %s21, 0
      %p111 = por %p109, %p110
      %s113 = sadd.s32 %s112, 1
      %p116 = scmp.eq.s32.totalorder %s15, 1
      %p117 = scmp.ne.s32.totalorder %s112, %s114
      %p118 = scmp.eq.s32.totalorder %s15, 0
      %p119 = por %p117, %p118
      %p120 = scmp.ne.s32.totalorder %s112, %s114
      %p121 = scmp.eq.s32.totalorder %s20, 1
      %p122 = por %p120, %p121
      %p123 = scmp.ne.s32.totalorder %s114, %s115
      %p124 = scmp.eq.s32.totalorder %s20, 0
      %p125 = por %p123, %p124
      %p126 = scmp.ne.s32.totalorder %s114, %s115
      %p127 = scmp.eq.s32.totalorder %s21, 1
      %p128 = por %p126, %p127
      %p130 = scmp.ne.s32.totalorder %s115, %s129
      %p131 = scmp.eq.s32.totalorder %s21, 0
      %p132 = por %p130, %p131
      %s134 = sadd.s32 %s133, 1
      %p137 = scmp.eq.s32.totalorder %s15, 1
      %p138 = scmp.ne.s32.totalorder %s133, %s135
      %p139 = scmp.eq.s32.totalorder %s15, 0
      %p140 = por %p138, %p139
      %p141 = scmp.ne.s32.totalorder %s133, %s135
      %p142 = scmp.eq.s32.totalorder %s20, 1
      %p143 = por %p141, %p142
      %p144 = scmp.ne.s32.totalorder %s135, %s136
      %p145 = scmp.eq.s32.totalorder %s20, 0
      %p146 = por %p144, %p145
      %p147 = scmp.ne.s32.totalorder %s135, %s136
      %p148 = scmp.eq.s32.totalorder %s21, 1
      %p149 = por %p147, %p148
      %p151 = scmp.ne.s32.totalorder %s136, %s150
      %p152 = scmp.eq.s32.totalorder %s21, 0
      %p153 = por %p151, %p152
      %s154 = ssub.s32 %s15, %s22
      %p155 = scmp.eq.s32.totalorder %s154, 0
      %s157 = sadd.s32 %s156, 1
      %s158 = scalar_select %p155, %s156, %s157
      %p161 = pneg %p155
      %p162 = scmp.eq.s32.totalorder %s15, 1
      %p163 = por %p161, %p162
      %p164 = scmp.ne.s32.totalorder %s156, %s159
      %p165 = scmp.eq.s32.totalorder %s15, 0
      %p166 = por %p164, %p165
      %p167 = scmp.ne.s32.totalorder %s156, %s159
      %p168 = scmp.eq.s32.totalorder %s20, 1
      %p169 = por %p167, %p168
      %p170 = scmp.ne.s32.totalorder %s159, %s160
      %p171 = scmp.eq.s32.totalorder %s20, 0
      %p172 = por %p170, %p171
      %p173 = scmp.ne.s32.totalorder %s159, %s160
      %p174 = scmp.eq.s32.totalorder %s21, 1
      %p175 = por %p173, %p174
      %p177 = scmp.ne.s32.totalorder %s160, %s176
      %p178 = scmp.eq.s32.totalorder %s21, 0
      %p179 = por %p177, %p178
      %p180 = scmp.le.s32.totalorder 1, %s15
      %p181 = scmp.lt.s32.totalorder %s15, 3
      %p182 = pnand %p180, %p181
      %p183 = pneg %p182
      // Predicated region
      $region9: #{tpu_custom_call.1} parent=5 // pred_check
        _
      $region10: #{tpu_custom_call.1} parent=5 // pred_check_branch
        %185 = sbr.rel (%p182) target = $region12
      $region11: #{tpu_custom_call.1} parent=5 // pred_region
        %s186 = ssub.s32 %s15, 1
        // Predicated region
        $region13: #{tpu_custom_call.1} parent=11 // pred_check
          %p187 = pneg %p62
        $region14: #{tpu_custom_call.1} parent=11 // pred_check_branch
          %189 = sbr.rel (%p187) target = $region16
        $region15: #{tpu_custom_call.1} parent=11 // pred_region
          _
        $region16: #{tpu_custom_call.1} parent=11 // pred_fallthru
          _
        // Predicated region
        $region17: #{tpu_custom_call.1} parent=11 // pred_check
          %p190 = pneg %p83
        $region18: #{tpu_custom_call.1} parent=11 // pred_check_branch
          %192 = sbr.rel (%p190) target = $region20
        $region19: #{tpu_custom_call.1} parent=11 // pred_region
          _
        $region20: #{tpu_custom_call.1} parent=11 // pred_fallthru
          _
        // Predicated region
        $region21: #{tpu_custom_call.1} parent=11 // pred_check
          %p193 = pneg %p104
        $region22: #{tpu_custom_call.1} parent=11 // pred_check_branch
          %195 = sbr.rel (%p193) target = $region24
        $region23: #{tpu_custom_call.1} parent=11 // pred_region
          _
        $region24: #{tpu_custom_call.1} parent=11 // pred_fallthru
          _
        // Predicated region
        $region25: #{tpu_custom_call.1} parent=11 // pred_check
          %p196 = pneg %p125
        $region26: #{tpu_custom_call.1} parent=11 // pred_check_branch
          %198 = sbr.rel (%p196) target = $region28
        $region27: #{tpu_custom_call.1} parent=11 // pred_region
          _
        $region28: #{tpu_custom_call.1} parent=11 // pred_fallthru
          _
        // Predicated region
        $region29: #{tpu_custom_call.1} parent=11 // pred_check
          %p199 = pneg %p146
        $region30: #{tpu_custom_call.1} parent=11 // pred_check_branch
          %201 = sbr.rel (%p199) target = $region32
        $region31: #{tpu_custom_call.1} parent=11 // pred_region
          _
        $region32: #{tpu_custom_call.1} parent=11 // pred_fallthru
          _
      $region12: #{tpu_custom_call.1} parent=5 // pred_fallthru
        _
      %p202 = scmp.lt.s32.totalorder %s15, 2
      // Predicated region
      $region33: #{tpu_custom_call.1} parent=5 // pred_check
        %p203 = pneg %p202
      $region34: #{tpu_custom_call.1} parent=5 // pred_check_branch
        %205 = sbr.rel (%p203) target = $region36
      $region35: #{tpu_custom_call.1} parent=5 // pred_region
        // Predicated region
        $region37: #{tpu_custom_call.1} parent=35 // pred_check
          %p206 = pneg %p35
        $region38: #{tpu_custom_call.1} parent=35 // pred_check_branch
          %208 = sbr.rel (%p206) target = $region40
        $region39: #{tpu_custom_call.1} parent=35 // pred_region
          %p209 = scmp.lt.s32.totalorder %s15, 1
          %s210 = scalar_select %p209, %s15, 1
          %s211 = smul.addr %s210, 54
          %s212 = smul.addr %s211, 2
          %s213 = scalar_lea.vmem %s0, %s212
        $region40: #{tpu_custom_call.1} parent=35 // pred_fallthru
          _
      $region36: #{tpu_custom_call.1} parent=5 // pred_fallthru
        _
      %p214 = scmp.le.s32.totalorder 1, %s15
      %p215 = scmp.lt.s32.totalorder %s15, 3
      %p216 = pnand %p214, %p215
      %p217 = pneg %p216
      // Predicated region
      $region41: #{tpu_custom_call.1} parent=5 // pred_check
        _
      $region42: #{tpu_custom_call.1} parent=5 // pred_check_branch
        %219 = sbr.rel (%p216) target = $region44
      $region43: #{tpu_custom_call.1} parent=5 // pred_region
        %s220 = ssub.s32 %s15, 1
        %p221 = scmp.lt.s32.totalorder %s20, 1
        %s222 = scalar_select %p221, %s20, 1
        %s223 = smul.addr %s222, 54
        %s224 = smul.addr %s223, 2
        %s225 = scalar_lea.vmem %s0, %s224
        %p226 = pneg %p41
        %p227 = pneg %p38
        %p228 = pneg %p62
        %p229 = pneg %p59
        %p230 = pneg %p83
        %p231 = pneg %p80
        %p232 = pneg %p104
        %p233 = pneg %p101
        %p234 = pneg %p125
        %p235 = pneg %p122
        %p236 = pneg %p146
        %p237 = pneg %p143
        %p238 = pneg %p172
        %p239 = pneg %p169
        %s240 = sand.u32 %s159, 1
        %s241 = scalar_lea.sflag [#allocation3], %s240
        %s242 = sand.u32 %s159, 1
        %s243 = smul.addr %s242, 16
        %s244 = scalar_lea.vmem [#allocation2], %s243
        %p245 = scmp.lt.s32.totalorder %s20, 1
        %s246 = scalar_select %p245, %s20, 1
        %s247 = smul.addr %s246, 54
        %s248 = smul.addr %s247, 2
        %s249 = scalar_lea.vmem %s0, %s248
        %v250 = vld [vmem:[%s249] sm:$0x3]
        %v251 = vld [vmem:[%s249 + $0x2] sm:$0x3]
        %v252 = vld [vmem:[%s249 + $0x4] sm:$0x1]
        %v253 = vld [vmem:[%s249 + $0x6] sm:$0x3]
        %v254 = vld [vmem:[%s249 + $0x8] sm:$0x3]
        %v255 = vld [vmem:[%s249 + $0xa] sm:$0x1]
        %v256 = vld [vmem:[%s249 + $0xc] sm:$0x3]
        %v257 = vld [vmem:[%s249 + $0xe] sm:$0x3]
        %v258 = vld [vmem:[%s249 + $0x10] sm:$0x1]
        %v259 = vld [vmem:[%s249 + $0x12] sm:$0x3]
        %v260 = vld [vmem:[%s249 + $0x14] sm:$0x3]
        %v261 = vld [vmem:[%s249 + $0x16] sm:$0x1]
        %v262 = vld [vmem:[%s249 + $0x18] sm:$0x3]
        %v263 = vld [vmem:[%s249 + $0x1a] sm:$0x3]
        %v264 = vld [vmem:[%s249 + $0x1c] sm:$0x1]
        %v265 = vld [vmem:[%s249 + $0x1e] sm:$0x3]
        %v266 = vld [vmem:[%s249 + $0x20] sm:$0x3]
        %v267 = vld [vmem:[%s249 + $0x22] sm:$0x1]
        %v268 = vld [vmem:[%s249 + $0x24] sm:$0x3]
        %v269 = vld [vmem:[%s249 + $0x26] sm:$0x3]
        %v270 = vld [vmem:[%s249 + $0x28] sm:$0x1]
        %v271 = vld [vmem:[%s249 + $0x2a] sm:$0x3]
        %v272 = vld [vmem:[%s249 + $0x2c] sm:$0x3]
        %v273 = vld [vmem:[%s249 + $0x2e] sm:$0x1]
        %v274 = vld [vmem:[%s249 + $0x30] sm:$0x3]
        %v275 = vld [vmem:[%s249 + $0x32] sm:$0x3]
        %v276 = vld [vmem:[%s249 + $0x34] sm:$0x1]
        %v277 = vld [vmem:[%s249 + $0x36] sm:$0x3]
        %v278 = vld [vmem:[%s249 + $0x38] sm:$0x3]
        %v279 = vld [vmem:[%s249 + $0x3a] sm:$0x1]
        %v280 = vld [vmem:[%s249 + $0x3c] sm:$0x3]
        %v281 = vld [vmem:[%s249 + $0x3e] sm:$0x3]
        %v282 = vld [vmem:[%s249 + $0x40] sm:$0x1]
        %v283 = vld [vmem:[%s249 + $0x42] sm:$0x3]
        %v284 = vld [vmem:[%s249 + $0x44] sm:$0x3]
        %v285 = vld [vmem:[%s249 + $0x46] sm:$0x1]
        %v286 = vld [vmem:[%s249 + $0x48] sm:$0x3]
        %v287 = vld [vmem:[%s249 + $0x4a] sm:$0x3]
        %v288 = vld [vmem:[%s249 + $0x4c] sm:$0x1]
        %v289 = vld [vmem:[%s249 + $0x4e] sm:$0x3]
        %v290 = vld [vmem:[%s249 + $0x50] sm:$0x3]
        %v291 = vld [vmem:[%s249 + $0x52] sm:$0x1]
        %v292 = vld [vmem:[%s249 + $0x54] sm:$0x3]
        %v293 = vld [vmem:[%s249 + $0x56] sm:$0x3]
        %v294 = vld [vmem:[%s249 + $0x58] sm:$0x1]
        %v295 = vld [vmem:[%s249 + $0x5a] sm:$0x3]
        %v296 = vld [vmem:[%s249 + $0x5c] sm:$0x3]
        %v297 = vld [vmem:[%s249 + $0x5e] sm:$0x1]
        %v298 = vld [vmem:[%s249 + $0x60] sm:$0x3]
        %v299 = vld [vmem:[%s249 + $0x62] sm:$0x3]
        %v300 = vld [vmem:[%s249 + $0x64] sm:$0x1]
        %v301 = vld [vmem:[%s249 + $0x66] sm:$0x3]
        %v302 = vld [vmem:[%s249 + $0x68] sm:$0x3]
        %v303 = vld [vmem:[%s249 + $0x6a] sm:$0x1]
        %v304 = vunpack.c.0.s8 %v250
        %v305 = vunpack.c.0.s8 %v251
        %v306 = vunpack.c.0.s8 %v252
        %v307 = vunpack.c.0.s8 %v253
        %v308 = vunpack.c.0.s8 %v254
        %v309 = vunpack.c.0.s8 %v255
        %v310 = vunpack.c.0.s8 %v256
        %v311 = vunpack.c.0.s8 %v257
        %v312 = vunpack.c.0.s8 %v258
        %v313 = vunpack.c.0.s8 %v259
        %v314 = vunpack.c.0.s8 %v260
        %v315 = vunpack.c.0.s8 %v261
        %v316 = vunpack.c.0.s8 %v262
        %v317 = vunpack.c.0.s8 %v263
        %v318 = vunpack.c.0.s8 %v264
        %v319 = vunpack.c.0.s8 %v265
        %v320 = vunpack.c.0.s8 %v266
        %v321 = vunpack.c.0.s8 %v267
        %v322 = vunpack.c.0.s8 %v268
        %v323 = vunpack.c.0.s8 %v269
        %v324 = vunpack.c.0.s8 %v270
        %v325 = vunpack.c.0.s8 %v271
        %v326 = vunpack.c.0.s8 %v272
        %v327 = vunpack.c.0.s8 %v273
        %v328 = vunpack.c.0.s8 %v274
        %v329 = vunpack.c.0.s8 %v275
        %v330 = vunpack.c.0.s8 %v276
        %v331 = vunpack.c.0.s8 %v277
        %v332 = vunpack.c.0.s8 %v278
        %v333 = vunpack.c.0.s8 %v279
        %v334 = vunpack.c.0.s8 %v280
        %v335 = vunpack.c.0.s8 %v281
        %v336 = vunpack.c.0.s8 %v282
        %v337 = vunpack.c.0.s8 %v283
        %v338 = vunpack.c.0.s8 %v284
        %v339 = vunpack.c.0.s8 %v285
        %v340 = vunpack.c.0.s8 %v286
        %v341 = vunpack.c.0.s8 %v287
        %v342 = vunpack.c.0.s8 %v288
        %v343 = vunpack.c.0.s8 %v289
        %v344 = vunpack.c.0.s8 %v290
        %v345 = vunpack.c.0.s8 %v291
        %v346 = vunpack.c.0.s8 %v292
        %v347 = vunpack.c.0.s8 %v293
        %v348 = vunpack.c.0.s8 %v294
        %v349 = vunpack.c.0.s8 %v295
        %v350 = vunpack.c.0.s8 %v296
        %v351 = vunpack.c.0.s8 %v297
        %v352 = vunpack.c.0.s8 %v298
        %v353 = vunpack.c.0.s8 %v299
        %v354 = vunpack.c.0.s8 %v300
        %v355 = vunpack.c.0.s8 %v301
        %v356 = vunpack.c.0.s8 %v302
        %v357 = vunpack.c.0.s8 %v303
        %v358 = vand.u32 %v304, 255
        %v359 = vand.u32 %v305, 255
        %v360 = vand.u32 %v306, 255
        %v361 = vand.u32 %v307, 255
        %v362 = vand.u32 %v308, 255
        %v363 = vand.u32 %v309, 255
        %v364 = vand.u32 %v310, 255
        %v365 = vand.u32 %v311, 255
        %v366 = vand.u32 %v312, 255
        %v367 = vand.u32 %v313, 255
        %v368 = vand.u32 %v314, 255
        %v369 = vand.u32 %v315, 255
        %v370 = vand.u32 %v316, 255
        %v371 = vand.u32 %v317, 255
        %v372 = vand.u32 %v318, 255
        %v373 = vand.u32 %v319, 255
        %v374 = vand.u32 %v320, 255
        %v375 = vand.u32 %v321, 255
        %v376 = vand.u32 %v322, 255
        %v377 = vand.u32 %v323, 255
        %v378 = vand.u32 %v324, 255
        %v379 = vand.u32 %v325, 255
        %v380 = vand.u32 %v326, 255
        %v381 = vand.u32 %v327, 255
        %v382 = vand.u32 %v328, 255
        %v383 = vand.u32 %v329, 255
        %v384 = vand.u32 %v330, 255
        %v385 = vand.u32 %v331, 255
        %v386 = vand.u32 %v332, 255
        %v387 = vand.u32 %v333, 255
        %v388 = vand.u32 %v334, 255
        %v389 = vand.u32 %v335, 255
        %v390 = vand.u32 %v336, 255
        %v391 = vand.u32 %v337, 255
        %v392 = vand.u32 %v338, 255
        %v393 = vand.u32 %v339, 255
        %v394 = vand.u32 %v340, 255
        %v395 = vand.u32 %v341, 255
        %v396 = vand.u32 %v342, 255
        %v397 = vand.u32 %v343, 255
        %v398 = vand.u32 %v344, 255
        %v399 = vand.u32 %v345, 255
        %v400 = vand.u32 %v346, 255
        %v401 = vand.u32 %v347, 255
        %v402 = vand.u32 %v348, 255
        %v403 = vand.u32 %v349, 255
        %v404 = vand.u32 %v350, 255
        %v405 = vand.u32 %v351, 255
        %v406 = vand.u32 %v352, 255
        %v407 = vand.u32 %v353, 255
        %v408 = vand.u32 %v354, 255
        %v409 = vand.u32 %v355, 255
        %v410 = vand.u32 %v356, 255
        %v411 = vand.u32 %v357, 255
        %v412 = vcvt.s32.f32 %v358
        %v413 = vcvt.s32.f32 %v359
        %v414 = vcvt.s32.f32 %v360
        %v415 = vcvt.s32.f32 %v361
        %v416 = vcvt.s32.f32 %v362
        %v417 = vcvt.s32.f32 %v363
        %v418 = vcvt.s32.f32 %v364
        %v419 = vcvt.s32.f32 %v365
        %v420 = vcvt.s32.f32 %v366
        %v421 = vcvt.s32.f32 %v367
        %v422 = vcvt.s32.f32 %v368
        %v423 = vcvt.s32.f32 %v369
        %v424 = vcvt.s32.f32 %v370
        %v425 = vcvt.s32.f32 %v371
        %v426 = vcvt.s32.f32 %v372
        %v427 = vcvt.s32.f32 %v373
        %v428 = vcvt.s32.f32 %v374
        %v429 = vcvt.s32.f32 %v375
        %v430 = vcvt.s32.f32 %v376
        %v431 = vcvt.s32.f32 %v377
        %v432 = vcvt.s32.f32 %v378
        %v433 = vcvt.s32.f32 %v379
        %v434 = vcvt.s32.f32 %v380
        %v435 = vcvt.s32.f32 %v381
        %v436 = vcvt.s32.f32 %v382
        %v437 = vcvt.s32.f32 %v383
        %v438 = vcvt.s32.f32 %v384
        %v439 = vcvt.s32.f32 %v385
        %v440 = vcvt.s32.f32 %v386
        %v441 = vcvt.s32.f32 %v387
        %v442 = vcvt.s32.f32 %v388
        %v443 = vcvt.s32.f32 %v389
        %v444 = vcvt.s32.f32 %v390
        %v445 = vcvt.s32.f32 %v391
        %v446 = vcvt.s32.f32 %v392
        %v447 = vcvt.s32.f32 %v393
        %v448 = vcvt.s32.f32 %v394
        %v449 = vcvt.s32.f32 %v395
        %v450 = vcvt.s32.f32 %v396
        %v451 = vcvt.s32.f32 %v397
        %v452 = vcvt.s32.f32 %v398
        %v453 = vcvt.s32.f32 %v399
        %v454 = vcvt.s32.f32 %v400
        %v455 = vcvt.s32.f32 %v401
        %v456 = vcvt.s32.f32 %v402
        %v457 = vcvt.s32.f32 %v403
        %v458 = vcvt.s32.f32 %v404
        %v459 = vcvt.s32.f32 %v405
        %v460 = vcvt.s32.f32 %v406
        %v461 = vcvt.s32.f32 %v407
        %v462 = vcvt.s32.f32 %v408
        %v463 = vcvt.s32.f32 %v409
        %v464 = vcvt.s32.f32 %v410
        %v465 = vcvt.s32.f32 %v411
        %v466 = vmul.f32 %v412, 0.017352074
        %v467 = vmul.f32 %v413, 0.017352074
        %v468 = vmul.f32 %v414, 0.017352074
        %v469 = vmul.f32 %v415, 0.017352074
        %v470 = vmul.f32 %v416, 0.017352074
        %v471 = vmul.f32 %v417, 0.017352074
        %v472 = vmul.f32 %v418, 0.017352074
        %v473 = vmul.f32 %v419, 0.017352074
        %v474 = vmul.f32 %v420, 0.017352074
        %v475 = vmul.f32 %v421, 0.017352074
        %v476 = vmul.f32 %v422, 0.017352074
        %v477 = vmul.f32 %v423, 0.017352074
        %v478 = vmul.f32 %v424, 0.017352074
        %v479 = vmul.f32 %v425, 0.017352074
        %v480 = vmul.f32 %v426, 0.017352074
        %v481 = vmul.f32 %v427, 0.017352074
        %v482 = vmul.f32 %v428, 0.017352074
        %v483 = vmul.f32 %v429, 0.017352074
        %v484 = vmul.f32 %v430, 0.017352074
        %v485 = vmul.f32 %v431, 0.017352074
        %v486 = vmul.f32 %v432, 0.017352074
        %v487 = vmul.f32 %v433, 0.017352074
        %v488 = vmul.f32 %v434, 0.017352074
        %v489 = vmul.f32 %v435, 0.017352074
        %v490 = vmul.f32 %v436, 0.017352074
        %v491 = vmul.f32 %v437, 0.017352074
        %v492 = vmul.f32 %v438, 0.017352074
        %v493 = vmul.f32 %v439, 0.017352074
        %v494 = vmul.f32 %v440, 0.017352074
        %v495 = vmul.f32 %v441, 0.017352074
        %v496 = vmul.f32 %v442, 0.017352074
        %v497 = vmul.f32 %v443, 0.017352074
        %v498 = vmul.f32 %v444, 0.017352074
        %v499 = vmul.f32 %v445, 0.017352074
        %v500 = vmul.f32 %v446, 0.017352074
        %v501 = vmul.f32 %v447, 0.017352074
        %v502 = vmul.f32 %v448, 0.017352074
        %v503 = vmul.f32 %v449, 0.017352074
        %v504 = vmul.f32 %v450, 0.017352074
        %v505 = vmul.f32 %v451, 0.017352074
        %v506 = vmul.f32 %v452, 0.017352074
        %v507 = vmul.f32 %v453, 0.017352074
        %v508 = vmul.f32 %v454, 0.017352074
        %v509 = vmul.f32 %v455, 0.017352074
        %v510 = vmul.f32 %v456, 0.017352074
        %v511 = vmul.f32 %v457, 0.017352074
        %v512 = vmul.f32 %v458, 0.017352074
        %v513 = vmul.f32 %v459, 0.017352074
        %v514 = vmul.f32 %v460, 0.017352074
        %v515 = vmul.f32 %v461, 0.017352074
        %v516 = vmul.f32 %v462, 0.017352074
        %v517 = vmul.f32 %v463, 0.017352074
        %v518 = vmul.f32 %v464, 0.017352074
        %v519 = vmul.f32 %v465, 0.017352074
        %v520 = vadd.f32 %v466, -1.9867257
        %v521 = vadd.f32 %v467, -1.9867257
        %v522 = vadd.f32 %v468, -1.9867257
        %v523 = vadd.f32 %v469, -1.9867257
        %v524 = vadd.f32 %v470, -1.9867257
        %v525 = vadd.f32 %v471, -1.9867257
        %v526 = vadd.f32 %v472, -1.9867257
        %v527 = vadd.f32 %v473, -1.9867257
        %v528 = vadd.f32 %v474, -1.9867257
        %v529 = vadd.f32 %v475, -1.9867257
        %v530 = vadd.f32 %v476, -1.9867257
        %v531 = vadd.f32 %v477, -1.9867257
        %v532 = vadd.f32 %v478, -1.9867257
        %v533 = vadd.f32 %v479, -1.9867257
        %v534 = vadd.f32 %v480, -1.9867257
        %v535 = vadd.f32 %v481, -1.9867257
        %v536 = vadd.f32 %v482, -1.9867257
        %v537 = vadd.f32 %v483, -1.9867257
        %v538 = vadd.f32 %v484, -1.9867257
        %v539 = vadd.f32 %v485, -1.9867257
        %v540 = vadd.f32 %v486, -1.9867257
        %v541 = vadd.f32 %v487, -1.9867257
        %v542 = vadd.f32 %v488, -1.9867257
        %v543 = vadd.f32 %v489, -1.9867257
        %v544 = vadd.f32 %v490, -1.9867257
        %v545 = vadd.f32 %v491, -1.9867257
        %v546 = vadd.f32 %v492, -1.9867257
        %v547 = vadd.f32 %v493, -1.9867257
        %v548 = vadd.f32 %v494, -1.9867257
        %v549 = vadd.f32 %v495, -1.9867257
        %v550 = vadd.f32 %v496, -1.9867257
        %v551 = vadd.f32 %v497, -1.9867257
        %v552 = vadd.f32 %v498, -1.9867257
        %v553 = vadd.f32 %v499, -1.9867257
        %v554 = vadd.f32 %v500, -1.9867257
        %v555 = vadd.f32 %v501, -1.9867257
        %v556 = vadd.f32 %v502, -1.9867257
        %v557 = vadd.f32 %v503, -1.9867257
        %v558 = vadd.f32 %v504, -1.9867257
        %v559 = vadd.f32 %v505, -1.9867257
        %v560 = vadd.f32 %v506, -1.9867257
        %v561 = vadd.f32 %v507, -1.9867257
        %v562 = vadd.f32 %v508, -1.9867257
        %v563 = vadd.f32 %v509, -1.9867257
        %v564 = vadd.f32 %v510, -1.9867257
        %v565 = vadd.f32 %v511, -1.9867257
        %v566 = vadd.f32 %v512, -1.9867257
        %v567 = vadd.f32 %v513, -1.9867257
        %v568 = vadd.f32 %v514, -1.9867257
        %v569 = vadd.f32 %v515, -1.9867257
        %v570 = vadd.f32 %v516, -1.9867257
        %v571 = vadd.f32 %v517, -1.9867257
        %v572 = vadd.f32 %v518, -1.9867257
        %v573 = vadd.f32 %v519, -1.9867257
        %v574 = vlaneseq
        %v575 = vshrl.u32 %v574, 7
        %v576 = vadd.s32 %v575, 8
        %v577 = vadd.s32 %v575, 16
        %vm578 = vcmp.ge.s32.totalorder %v575, 1
        %vm579 = vcmp.ge.s32.totalorder %v576, 1
        %vm580 = vcmp.ge.s32.totalorder %v577, 1
        %vm581 = vmand 0, %vm578
        %vm582 = vmand 0, %vm579
        %vm583 = vmand 0, %vm580
        %vm584 = vmand 1, %vm578
        %vm585 = vmand 1, %vm579
        %vm586 = vmand 1, %vm580
        %vm587 = vcmp.le.s32.totalorder %v575, 16
        %vm588 = vcmp.le.s32.totalorder %v576, 16
        %vm589 = vcmp.le.s32.totalorder %v577, 16
        %vm590 = vmand %vm581, %vm587
        %vm591 = vmand %vm582, %vm588
        %vm592 = vmand %vm583, %vm589
        %vm593 = vmand %vm584, %vm587
        %vm594 = vmand %vm585, %vm588
        %vm595 = vmand %vm586, %vm589
        %v596 = vsel %vm590, %v520, 0.0
        %v597 = vsel %vm591, %v521, 0.0
        %v598 = vsel %vm592, %v522, 0.0
        %v599 = vsel %vm593, %v523, 0.0
        %v600 = vsel %vm594, %v524, 0.0
        %v601 = vsel %vm595, %v525, 0.0
        %v602 = vsel %vm593, %v526, 0.0
        %v603 = vsel %vm594, %v527, 0.0
        %v604 = vsel %vm595, %v528, 0.0
        %v605 = vsel %vm593, %v529, 0.0
        %v606 = vsel %vm594, %v530, 0.0
        %v607 = vsel %vm595, %v531, 0.0
        %v608 = vsel %vm593, %v532, 0.0
        %v609 = vsel %vm594, %v533, 0.0
        %v610 = vsel %vm595, %v534, 0.0
        %v611 = vsel %vm593, %v535, 0.0
        %v612 = vsel %vm594, %v536, 0.0
        %v613 = vsel %vm595, %v537, 0.0
        %v614 = vsel %vm593, %v538, 0.0
        %v615 = vsel %vm594, %v539, 0.0
        %v616 = vsel %vm595, %v540, 0.0
        %v617 = vsel %vm593, %v541, 0.0
        %v618 = vsel %vm594, %v542, 0.0
        %v619 = vsel %vm595, %v543, 0.0
        %v620 = vsel %vm593, %v544, 0.0
        %v621 = vsel %vm594, %v545, 0.0
        %v622 = vsel %vm595, %v546, 0.0
        %v623 = vsel %vm593, %v547, 0.0
        %v624 = vsel %vm594, %v548, 0.0
        %v625 = vsel %vm595, %v549, 0.0
        %v626 = vsel %vm593, %v550, 0.0
        %v627 = vsel %vm594, %v551, 0.0
        %v628 = vsel %vm595, %v552, 0.0
        %v629 = vsel %vm593, %v553, 0.0
        %v630 = vsel %vm594, %v554, 0.0
        %v631 = vsel %vm595, %v555, 0.0
        %v632 = vsel %vm593, %v556, 0.0
        %v633 = vsel %vm594, %v557, 0.0
        %v634 = vsel %vm595, %v558, 0.0
        %v635 = vsel %vm593, %v559, 0.0
        %v636 = vsel %vm594, %v560, 0.0
        %v637 = vsel %vm595, %v561, 0.0
        %v638 = vsel %vm593, %v562, 0.0
        %v639 = vsel %vm594, %v563, 0.0
        %v640 = vsel %vm595, %v564, 0.0
        %v641 = vsel %vm593, %v565, 0.0
        %v642 = vsel %vm594, %v566, 0.0
        %v643 = vsel %vm595, %v567, 0.0
        %v644 = vsel %vm593, %v568, 0.0
        %v645 = vsel %vm594, %v569, 0.0
        %v646 = vsel %vm595, %v570, 0.0
        %v647 = vsel %vm590, %v571, 0.0
        %v648 = vsel %vm591, %v572, 0.0
        %v649 = vsel %vm592, %v573, 0.0
        %vm704 = vcmask 1046528
        %v705 = vrot.slane %v596, 1
        %v706 = vrot.slane %v597, 1
        %v707 = vsel %vm704, %v705, %v706
        %v708 = vrot.slane %v598, 1
        %v709 = vsel %vm704, %v706, %v708
        %v710 = vrot.slane %v599, 1
        %v711 = vrot.slane %v600, 1
        %v712 = vsel %vm704, %v710, %v711
        %v713 = vrot.slane %v601, 1
        %v714 = vsel %vm704, %v711, %v713
        %v715 = vrot.slane %v602, 1
        %v716 = vrot.slane %v603, 1
        %v717 = vsel %vm704, %v715, %v716
        %v718 = vrot.slane %v604, 1
        %v719 = vsel %vm704, %v716, %v718
        %v720 = vrot.slane %v605, 1
        %v721 = vrot.slane %v606, 1
        %v722 = vsel %vm704, %v720, %v721
        %v723 = vrot.slane %v607, 1
        %v724 = vsel %vm704, %v721, %v723
        %v725 = vrot.slane %v608, 1
        %v726 = vrot.slane %v609, 1
        %v727 = vsel %vm704, %v725, %v726
        %v728 = vrot.slane %v610, 1
        %v729 = vsel %vm704, %v726, %v728
        %v730 = vrot.slane %v611, 1
        %v731 = vrot.slane %v612, 1
        %v732 = vsel %vm704, %v730, %v731
        %v733 = vrot.slane %v613, 1
        %v734 = vsel %vm704, %v731, %v733
        %v735 = vrot.slane %v614, 1
        %v736 = vrot.slane %v615, 1
        %v737 = vsel %vm704, %v735, %v736
        %v738 = vrot.slane %v616, 1
        %v739 = vsel %vm704, %v736, %v738
        %v740 = vrot.slane %v617, 1
        %v741 = vrot.slane %v618, 1
        %v742 = vsel %vm704, %v740, %v741
        %v743 = vrot.slane %v619, 1
        %v744 = vsel %vm704, %v741, %v743
        %v745 = vrot.slane %v620, 1
        %v746 = vrot.slane %v621, 1
        %v747 = vsel %vm704, %v745, %v746
        %v748 = vrot.slane %v622, 1
        %v749 = vsel %vm704, %v746, %v748
        %v750 = vrot.slane %v623, 1
        %v751 = vrot.slane %v624, 1
        %v752 = vsel %vm704, %v750, %v751
        %v753 = vrot.slane %v625, 1
        %v754 = vsel %vm704, %v751, %v753
        %v755 = vrot.slane %v626, 1
        %v756 = vrot.slane %v627, 1
        %v757 = vsel %vm704, %v755, %v756
        %v758 = vrot.slane %v628, 1
        %v759 = vsel %vm704, %v756, %v758
        %v760 = vrot.slane %v629, 1
        %v761 = vrot.slane %v630, 1
        %v762 = vsel %vm704, %v760, %v761
        %v763 = vrot.slane %v631, 1
        %v764 = vsel %vm704, %v761, %v763
        %v765 = vrot.slane %v632, 1
        %v766 = vrot.slane %v633, 1
        %v767 = vsel %vm704, %v765, %v766
        %v768 = vrot.slane %v634, 1
        %v769 = vsel %vm704, %v766, %v768
        %v770 = vrot.slane %v635, 1
        %v771 = vrot.slane %v636, 1
        %v772 = vsel %vm704, %v770, %v771
        %v773 = vrot.slane %v637, 1
        %v774 = vsel %vm704, %v771, %v773
        %v775 = vrot.slane %v638, 1
        %v776 = vrot.slane %v639, 1
        %v777 = vsel %vm704, %v775, %v776
        %v778 = vrot.slane %v640, 1
        %v779 = vsel %vm704, %v776, %v778
        %v780 = vrot.slane %v641, 1
        %v781 = vrot.slane %v642, 1
        %v782 = vsel %vm704, %v780, %v781
        %v783 = vrot.slane %v643, 1
        %v784 = vsel %vm704, %v781, %v783
        %v785 = vrot.slane %v644, 1
        %v786 = vrot.slane %v645, 1
        %v787 = vsel %vm704, %v785, %v786
        %v788 = vrot.slane %v646, 1
        %v789 = vsel %vm704, %v786, %v788
        %v790 = vrot.slane %v647, 1
        %v791 = vrot.slane %v648, 1
        %v792 = vsel %vm704, %v790, %v791
        %v793 = vrot.slane %v649, 1
        %v794 = vsel %vm704, %v791, %v793
        %795 = vrot.lane.b32.xlu0 %v707, 4
        %v796 = vpop.permute.xlu0 %795
        %797 = vrot.lane.b32.xlu0 %v709, 4
        %v798 = vpop.permute.xlu0 %797
        %799 = vrot.lane.b32.xlu0 %v712, 4
        %v800 = vpop.permute.xlu0 %799
        %801 = vrot.lane.b32.xlu0 %v714, 4
        %v802 = vpop.permute.xlu0 %801
        %803 = vrot.lane.b32.xlu0 %v717, 4
        %v804 = vpop.permute.xlu0 %803
        %805 = vrot.lane.b32.xlu0 %v719, 4
        %v806 = vpop.permute.xlu0 %805
        %807 = vrot.lane.b32.xlu0 %v722, 4
        %v808 = vpop.permute.xlu0 %807
        %809 = vrot.lane.b32.xlu0 %v724, 4
        %v810 = vpop.permute.xlu0 %809
        %811 = vrot.lane.b32.xlu0 %v727, 4
        %v812 = vpop.permute.xlu0 %811
        %813 = vrot.lane.b32.xlu0 %v729, 4
        %v814 = vpop.permute.xlu0 %813
        %815 = vrot.lane.b32.xlu0 %v732, 4
        %v816 = vpop.permute.xlu0 %815
        %817 = vrot.lane.b32.xlu0 %v734, 4
        %v818 = vpop.permute.xlu0 %817
        %819 = vrot.lane.b32.xlu0 %v737, 4
        %v820 = vpop.permute.xlu0 %819
        %821 = vrot.lane.b32.xlu0 %v739, 4
        %v822 = vpop.permute.xlu0 %821
        %823 = vrot.lane.b32.xlu0 %v742, 4
        %v824 = vpop.permute.xlu0 %823
        %825 = vrot.lane.b32.xlu0 %v744, 4
        %v826 = vpop.permute.xlu0 %825
        %827 = vrot.lane.b32.xlu0 %v747, 4
        %v828 = vpop.permute.xlu0 %827
        %829 = vrot.lane.b32.xlu0 %v749, 4
        %v830 = vpop.permute.xlu0 %829
        %831 = vrot.lane.b32.xlu0 %v752, 4
        %v832 = vpop.permute.xlu0 %831
        %833 = vrot.lane.b32.xlu0 %v754, 4
        %v834 = vpop.permute.xlu0 %833
        %835 = vrot.lane.b32.xlu0 %v757, 4
        %v836 = vpop.permute.xlu0 %835
        %837 = vrot.lane.b32.xlu0 %v759, 4
        %v838 = vpop.permute.xlu0 %837
        %839 = vrot.lane.b32.xlu0 %v762, 4
        %v840 = vpop.permute.xlu0 %839
        %841 = vrot.lane.b32.xlu0 %v764, 4
        %v842 = vpop.permute.xlu0 %841
        %843 = vrot.lane.b32.xlu0 %v767, 4
        %v844 = vpop.permute.xlu0 %843
        %845 = vrot.lane.b32.xlu0 %v769, 4
        %v846 = vpop.permute.xlu0 %845
        %847 = vrot.lane.b32.xlu0 %v772, 4
        %v848 = vpop.permute.xlu0 %847
        %849 = vrot.lane.b32.xlu0 %v774, 4
        %v850 = vpop.permute.xlu0 %849
        %851 = vrot.lane.b32.xlu0 %v777, 4
        %v852 = vpop.permute.xlu0 %851
        %853 = vrot.lane.b32.xlu0 %v779, 4
        %v854 = vpop.permute.xlu0 %853
        %855 = vrot.lane.b32.xlu0 %v782, 4
        %v856 = vpop.permute.xlu0 %855
        %857 = vrot.lane.b32.xlu0 %v784, 4
        %v858 = vpop.permute.xlu0 %857
        %859 = vrot.lane.b32.xlu0 %v787, 4
        %v860 = vpop.permute.xlu0 %859
        %861 = vrot.lane.b32.xlu0 %v789, 4
        %v862 = vpop.permute.xlu0 %861
        %863 = vrot.lane.b32.xlu0 %v792, 4
        %v864 = vpop.permute.xlu0 %863
        %865 = vrot.lane.b32.xlu0 %v794, 4
        %v866 = vpop.permute.xlu0 %865
        %vm903 = vcmask 1045504
        %v904 = vrot.slane %v596, 2
        %v905 = vrot.slane %v597, 2
        %v906 = vsel %vm903, %v904, %v905
        %v907 = vrot.slane %v598, 2
        %v908 = vsel %vm903, %v905, %v907
        %v909 = vrot.slane %v599, 2
        %v910 = vrot.slane %v600, 2
        %v911 = vsel %vm903, %v909, %v910
        %v912 = vrot.slane %v601, 2
        %v913 = vsel %vm903, %v910, %v912
        %v914 = vrot.slane %v602, 2
        %v915 = vrot.slane %v603, 2
        %v916 = vsel %vm903, %v914, %v915
        %v917 = vrot.slane %v604, 2
        %v918 = vsel %vm903, %v915, %v917
        %v919 = vrot.slane %v605, 2
        %v920 = vrot.slane %v606, 2
        %v921 = vsel %vm903, %v919, %v920
        %v922 = vrot.slane %v607, 2
        %v923 = vsel %vm903, %v920, %v922
        %v924 = vrot.slane %v608, 2
        %v925 = vrot.slane %v609, 2
        %v926 = vsel %vm903, %v924, %v925
        %v927 = vrot.slane %v610, 2
        %v928 = vsel %vm903, %v925, %v927
        %v929 = vrot.slane %v611, 2
        %v930 = vrot.slane %v612, 2
        %v931 = vsel %vm903, %v929, %v930
        %v932 = vrot.slane %v613, 2
        %v933 = vsel %vm903, %v930, %v932
        %v934 = vrot.slane %v614, 2
        %v935 = vrot.slane %v615, 2
        %v936 = vsel %vm903, %v934, %v935
        %v937 = vrot.slane %v616, 2
        %v938 = vsel %vm903, %v935, %v937
        %v939 = vrot.slane %v617, 2
        %v940 = vrot.slane %v618, 2
        %v941 = vsel %vm903, %v939, %v940
        %v942 = vrot.slane %v619, 2
        %v943 = vsel %vm903, %v940, %v942
        %v944 = vrot.slane %v620, 2
        %v945 = vrot.slane %v621, 2
        %v946 = vsel %vm903, %v944, %v945
        %v947 = vrot.slane %v622, 2
        %v948 = vsel %vm903, %v945, %v947
        %v949 = vrot.slane %v623, 2
        %v950 = vrot.slane %v624, 2
        %v951 = vsel %vm903, %v949, %v950
        %v952 = vrot.slane %v625, 2
        %v953 = vsel %vm903, %v950, %v952
        %v954 = vrot.slane %v626, 2
        %v955 = vrot.slane %v627, 2
        %v956 = vsel %vm903, %v954, %v955
        %v957 = vrot.slane %v628, 2
        %v958 = vsel %vm903, %v955, %v957
        %v959 = vrot.slane %v629, 2
        %v960 = vrot.slane %v630, 2
        %v961 = vsel %vm903, %v959, %v960
        %v962 = vrot.slane %v631, 2
        %v963 = vsel %vm903, %v960, %v962
        %v964 = vrot.slane %v632, 2
        %v965 = vrot.slane %v633, 2
        %v966 = vsel %vm903, %v964, %v965
        %v967 = vrot.slane %v634, 2
        %v968 = vsel %vm903, %v965, %v967
        %v969 = vrot.slane %v635, 2
        %v970 = vrot.slane %v636, 2
        %v971 = vsel %vm903, %v969, %v970
        %v972 = vrot.slane %v637, 2
        %v973 = vsel %vm903, %v970, %v972
        %v974 = vrot.slane %v638, 2
        %v975 = vrot.slane %v639, 2
        %v976 = vsel %vm903, %v974, %v975
        %v977 = vrot.slane %v640, 2
        %v978 = vsel %vm903, %v975, %v977
        %v979 = vrot.slane %v641, 2
        %v980 = vrot.slane %v642, 2
        %v981 = vsel %vm903, %v979, %v980
        %v982 = vrot.slane %v643, 2
        %v983 = vsel %vm903, %v980, %v982
        %v984 = vrot.slane %v644, 2
        %v985 = vrot.slane %v645, 2
        %v986 = vsel %vm903, %v984, %v985
        %v987 = vrot.slane %v646, 2
        %v988 = vsel %vm903, %v985, %v987
        %v989 = vrot.slane %v647, 2
        %v990 = vrot.slane %v648, 2
        %v991 = vsel %vm903, %v989, %v990
        %v992 = vrot.slane %v649, 2
        %v993 = vsel %vm903, %v990, %v992
        %994 = vrot.lane.b32.xlu0 %v906, 8
        %v995 = vpop.permute.xlu0 %994
        %996 = vrot.lane.b32.xlu0 %v908, 8
        %v997 = vpop.permute.xlu0 %996
        %998 = vrot.lane.b32.xlu0 %v911, 8
        %v999 = vpop.permute.xlu0 %998
        %1000 = vrot.lane.b32.xlu0 %v913, 8
        %v1001 = vpop.permute.xlu0 %1000
        %1002 = vrot.lane.b32.xlu0 %v916, 8
        %v1003 = vpop.permute.xlu0 %1002
        %1004 = vrot.lane.b32.xlu0 %v918, 8
        %v1005 = vpop.permute.xlu0 %1004
        %1006 = vrot.lane.b32.xlu0 %v921, 8
        %v1007 = vpop.permute.xlu0 %1006
        %1008 = vrot.lane.b32.xlu0 %v923, 8
        %v1009 = vpop.permute.xlu0 %1008
        %1010 = vrot.lane.b32.xlu0 %v926, 8
        %v1011 = vpop.permute.xlu0 %1010
        %1012 = vrot.lane.b32.xlu0 %v928, 8
        %v1013 = vpop.permute.xlu0 %1012
        %1014 = vrot.lane.b32.xlu0 %v931, 8
        %v1015 = vpop.permute.xlu0 %1014
        %1016 = vrot.lane.b32.xlu0 %v933, 8
        %v1017 = vpop.permute.xlu0 %1016
        %1018 = vrot.lane.b32.xlu0 %v936, 8
        %v1019 = vpop.permute.xlu0 %1018
        %1020 = vrot.lane.b32.xlu0 %v938, 8
        %v1021 = vpop.permute.xlu0 %1020
        %1022 = vrot.lane.b32.xlu0 %v941, 8
        %v1023 = vpop.permute.xlu0 %1022
        %1024 = vrot.lane.b32.xlu0 %v943, 8
        %v1025 = vpop.permute.xlu0 %1024
        %1026 = vrot.lane.b32.xlu0 %v946, 8
        %v1027 = vpop.permute.xlu0 %1026
        %1028 = vrot.lane.b32.xlu0 %v948, 8
        %v1029 = vpop.permute.xlu0 %1028
        %1030 = vrot.lane.b32.xlu0 %v951, 8
        %v1031 = vpop.permute.xlu0 %1030
        %1032 = vrot.lane.b32.xlu0 %v953, 8
        %v1033 = vpop.permute.xlu0 %1032
        %1034 = vrot.lane.b32.xlu0 %v956, 8
        %v1035 = vpop.permute.xlu0 %1034
        %1036 = vrot.lane.b32.xlu0 %v958, 8
        %v1037 = vpop.permute.xlu0 %1036
        %1038 = vrot.lane.b32.xlu0 %v961, 8
        %v1039 = vpop.permute.xlu0 %1038
        %1040 = vrot.lane.b32.xlu0 %v963, 8
        %v1041 = vpop.permute.xlu0 %1040
        %1042 = vrot.lane.b32.xlu0 %v966, 8
        %v1043 = vpop.permute.xlu0 %1042
        %1044 = vrot.lane.b32.xlu0 %v968, 8
        %v1045 = vpop.permute.xlu0 %1044
        %1046 = vrot.lane.b32.xlu0 %v971, 8
        %v1047 = vpop.permute.xlu0 %1046
        %1048 = vrot.lane.b32.xlu0 %v973, 8
        %v1049 = vpop.permute.xlu0 %1048
        %1050 = vrot.lane.b32.xlu0 %v976, 8
        %v1051 = vpop.permute.xlu0 %1050
        %1052 = vrot.lane.b32.xlu0 %v978, 8
        %v1053 = vpop.permute.xlu0 %1052
        %1054 = vrot.lane.b32.xlu0 %v981, 8
        %v1055 = vpop.permute.xlu0 %1054
        %1056 = vrot.lane.b32.xlu0 %v983, 8
        %v1057 = vpop.permute.xlu0 %1056
        %1058 = vrot.lane.b32.xlu0 %v986, 8
        %v1059 = vpop.permute.xlu0 %1058
        %1060 = vrot.lane.b32.xlu0 %v988, 8
        %v1061 = vpop.permute.xlu0 %1060
        %1062 = vrot.lane.b32.xlu0 %v991, 8
        %v1063 = vpop.permute.xlu0 %1062
        %1064 = vrot.lane.b32.xlu0 %v993, 8
        %v1065 = vpop.permute.xlu0 %1064
        %vm1102 = vcmask 31744
        %v1103 = vsel %vm1102, %v596, %v796
        %v1104 = vsel %vm1102, %v597, %v798
        %v1105 = vsel %vm1102, %v599, %v800
        %v1106 = vsel %vm1102, %v600, %v802
        %v1107 = vsel %vm1102, %v602, %v804
        %v1108 = vsel %vm1102, %v603, %v806
        %v1109 = vsel %vm1102, %v605, %v808
        %v1110 = vsel %vm1102, %v606, %v810
        %v1111 = vsel %vm1102, %v608, %v812
        %v1112 = vsel %vm1102, %v609, %v814
        %v1113 = vsel %vm1102, %v611, %v816
        %v1114 = vsel %vm1102, %v612, %v818
        %v1115 = vsel %vm1102, %v614, %v820
        %v1116 = vsel %vm1102, %v615, %v822
        %v1117 = vsel %vm1102, %v617, %v824
        %v1118 = vsel %vm1102, %v618, %v826
        %v1119 = vsel %vm1102, %v620, %v828
        %v1120 = vsel %vm1102, %v621, %v830
        %v1121 = vsel %vm1102, %v623, %v832
        %v1122 = vsel %vm1102, %v624, %v834
        %v1123 = vsel %vm1102, %v626, %v836
        %v1124 = vsel %vm1102, %v627, %v838
        %v1125 = vsel %vm1102, %v629, %v840
        %v1126 = vsel %vm1102, %v630, %v842
        %v1127 = vsel %vm1102, %v632, %v844
        %v1128 = vsel %vm1102, %v633, %v846
        %v1129 = vsel %vm1102, %v635, %v848
        %v1130 = vsel %vm1102, %v636, %v850
        %v1131 = vsel %vm1102, %v638, %v852
        %v1132 = vsel %vm1102, %v639, %v854
        %v1133 = vsel %vm1102, %v641, %v856
        %v1134 = vsel %vm1102, %v642, %v858
        %v1135 = vsel %vm1102, %v644, %v860
        %v1136 = vsel %vm1102, %v645, %v862
        %v1137 = vsel %vm1102, %v647, %v864
        %v1138 = vsel %vm1102, %v648, %v866
        %vm1139 = vcmask 64512
        %v1140 = vsel %vm1139, %v1103, %v995
        %v1141 = vsel %vm1139, %v1104, %v997
        %v1142 = vsel %vm1139, %v1105, %v999
        %v1143 = vsel %vm1139, %v1106, %v1001
        %v1144 = vsel %vm1139, %v1107, %v1003
        %v1145 = vsel %vm1139, %v1108, %v1005
        %v1146 = vsel %vm1139, %v1109, %v1007
        %v1147 = vsel %vm1139, %v1110, %v1009
        %v1148 = vsel %vm1139, %v1111, %v1011
        %v1149 = vsel %vm1139, %v1112, %v1013
        %v1150 = vsel %vm1139, %v1113, %v1015
        %v1151 = vsel %vm1139, %v1114, %v1017
        %v1152 = vsel %vm1139, %v1115, %v1019
        %v1153 = vsel %vm1139, %v1116, %v1021
        %v1154 = vsel %vm1139, %v1117, %v1023
        %v1155 = vsel %vm1139, %v1118, %v1025
        %v1156 = vsel %vm1139, %v1119, %v1027
        %v1157 = vsel %vm1139, %v1120, %v1029
        %v1158 = vsel %vm1139, %v1121, %v1031
        %v1159 = vsel %vm1139, %v1122, %v1033
        %v1160 = vsel %vm1139, %v1123, %v1035
        %v1161 = vsel %vm1139, %v1124, %v1037
        %v1162 = vsel %vm1139, %v1125, %v1039
        %v1163 = vsel %vm1139, %v1126, %v1041
        %v1164 = vsel %vm1139, %v1127, %v1043
        %v1165 = vsel %vm1139, %v1128, %v1045
        %v1166 = vsel %vm1139, %v1129, %v1047
        %v1167 = vsel %vm1139, %v1130, %v1049
        %v1168 = vsel %vm1139, %v1131, %v1051
        %v1169 = vsel %vm1139, %v1132, %v1053
        %v1170 = vsel %vm1139, %v1133, %v1055
        %v1171 = vsel %vm1139, %v1134, %v1057
        %v1172 = vsel %vm1139, %v1135, %v1059
        %v1173 = vsel %vm1139, %v1136, %v1061
        %v1174 = vsel %vm1139, %v1137, %v1063
        %v1175 = vsel %vm1139, %v1138, %v1065
        %1208 = vrot.lane.b32.xlu0 %v1142, 12
        %v1209 = vpop.permute.xlu0 %1208
        %1210 = vrot.lane.b32.xlu0 %v1143, 12
        %v1211 = vpop.permute.xlu0 %1210
        %1212 = vrot.lane.b32.xlu0 %v1144, 12
        %v1213 = vpop.permute.xlu0 %1212
        %1214 = vrot.lane.b32.xlu0 %v1145, 12
        %v1215 = vpop.permute.xlu0 %1214
        %1216 = vrot.lane.b32.xlu0 %v1146, 12
        %v1217 = vpop.permute.xlu0 %1216
        %1218 = vrot.lane.b32.xlu0 %v1147, 12
        %v1219 = vpop.permute.xlu0 %1218
        %1220 = vrot.lane.b32.xlu0 %v1148, 12
        %v1221 = vpop.permute.xlu0 %1220
        %1222 = vrot.lane.b32.xlu0 %v1149, 12
        %v1223 = vpop.permute.xlu0 %1222
        %1224 = vrot.lane.b32.xlu0 %v1150, 12
        %v1225 = vpop.permute.xlu0 %1224
        %1226 = vrot.lane.b32.xlu0 %v1151, 12
        %v1227 = vpop.permute.xlu0 %1226
        %1228 = vrot.lane.b32.xlu0 %v1152, 12
        %v1229 = vpop.permute.xlu0 %1228
        %1230 = vrot.lane.b32.xlu0 %v1153, 12
        %v1231 = vpop.permute.xlu0 %1230
        %1232 = vrot.lane.b32.xlu0 %v1154, 12
        %v1233 = vpop.permute.xlu0 %1232
        %1234 = vrot.lane.b32.xlu0 %v1155, 12
        %v1235 = vpop.permute.xlu0 %1234
        %1236 = vrot.lane.b32.xlu0 %v1156, 12
        %v1237 = vpop.permute.xlu0 %1236
        %1238 = vrot.lane.b32.xlu0 %v1157, 12
        %v1239 = vpop.permute.xlu0 %1238
        %1240 = vrot.lane.b32.xlu0 %v1158, 12
        %v1241 = vpop.permute.xlu0 %1240
        %1242 = vrot.lane.b32.xlu0 %v1159, 12
        %v1243 = vpop.permute.xlu0 %1242
        %1244 = vrot.lane.b32.xlu0 %v1160, 12
        %v1245 = vpop.permute.xlu0 %1244
        %1246 = vrot.lane.b32.xlu0 %v1161, 12
        %v1247 = vpop.permute.xlu0 %1246
        %1248 = vrot.lane.b32.xlu0 %v1162, 12
        %v1249 = vpop.permute.xlu0 %1248
        %1250 = vrot.lane.b32.xlu0 %v1163, 12
        %v1251 = vpop.permute.xlu0 %1250
        %1252 = vrot.lane.b32.xlu0 %v1164, 12
        %v1253 = vpop.permute.xlu0 %1252
        %1254 = vrot.lane.b32.xlu0 %v1165, 12
        %v1255 = vpop.permute.xlu0 %1254
        %1256 = vrot.lane.b32.xlu0 %v1166, 12
        %v1257 = vpop.permute.xlu0 %1256
        %1258 = vrot.lane.b32.xlu0 %v1167, 12
        %v1259 = vpop.permute.xlu0 %1258
        %1260 = vrot.lane.b32.xlu0 %v1168, 12
        %v1261 = vpop.permute.xlu0 %1260
        %1262 = vrot.lane.b32.xlu0 %v1169, 12
        %v1263 = vpop.permute.xlu0 %1262
        %1264 = vrot.lane.b32.xlu0 %v1170, 12
        %v1265 = vpop.permute.xlu0 %1264
        %1266 = vrot.lane.b32.xlu0 %v1171, 12
        %v1267 = vpop.permute.xlu0 %1266
        %1268 = vrot.lane.b32.xlu0 %v1172, 12
        %v1269 = vpop.permute.xlu0 %1268
        %1270 = vrot.lane.b32.xlu0 %v1173, 12
        %v1271 = vpop.permute.xlu0 %1270
        %1306 = vrot.lane.b32.xlu0 %v1144, 24
        %v1307 = vpop.permute.xlu0 %1306
        %1308 = vrot.lane.b32.xlu0 %v1145, 24
        %v1309 = vpop.permute.xlu0 %1308
        %1310 = vrot.lane.b32.xlu0 %v1146, 24
        %v1311 = vpop.permute.xlu0 %1310
        %1312 = vrot.lane.b32.xlu0 %v1147, 24
        %v1313 = vpop.permute.xlu0 %1312
        %1314 = vrot.lane.b32.xlu0 %v1148, 24
        %v1315 = vpop.permute.xlu0 %1314
        %1316 = vrot.lane.b32.xlu0 %v1149, 24
        %v1317 = vpop.permute.xlu0 %1316
        %1318 = vrot.lane.b32.xlu0 %v1150, 24
        %v1319 = vpop.permute.xlu0 %1318
        %1320 = vrot.lane.b32.xlu0 %v1151, 24
        %v1321 = vpop.permute.xlu0 %1320
        %1322 = vrot.lane.b32.xlu0 %v1152, 24
        %v1323 = vpop.permute.xlu0 %1322
        %1324 = vrot.lane.b32.xlu0 %v1153, 24
        %v1325 = vpop.permute.xlu0 %1324
        %1326 = vrot.lane.b32.xlu0 %v1154, 24
        %v1327 = vpop.permute.xlu0 %1326
        %1328 = vrot.lane.b32.xlu0 %v1155, 24
        %v1329 = vpop.permute.xlu0 %1328
        %1330 = vrot.lane.b32.xlu0 %v1156, 24
        %v1331 = vpop.permute.xlu0 %1330
        %1332 = vrot.lane.b32.xlu0 %v1157, 24
        %v1333 = vpop.permute.xlu0 %1332
        %1334 = vrot.lane.b32.xlu0 %v1158, 24
        %v1335 = vpop.permute.xlu0 %1334
        %1336 = vrot.lane.b32.xlu0 %v1159, 24
        %v1337 = vpop.permute.xlu0 %1336
        %1338 = vrot.lane.b32.xlu0 %v1160, 24
        %v1339 = vpop.permute.xlu0 %1338
        %1340 = vrot.lane.b32.xlu0 %v1161, 24
        %v1341 = vpop.permute.xlu0 %1340
        %1342 = vrot.lane.b32.xlu0 %v1162, 24
        %v1343 = vpop.permute.xlu0 %1342
        %1344 = vrot.lane.b32.xlu0 %v1163, 24
        %v1345 = vpop.permute.xlu0 %1344
        %1346 = vrot.lane.b32.xlu0 %v1164, 24
        %v1347 = vpop.permute.xlu0 %1346
        %1348 = vrot.lane.b32.xlu0 %v1165, 24
        %v1349 = vpop.permute.xlu0 %1348
        %1350 = vrot.lane.b32.xlu0 %v1166, 24
        %v1351 = vpop.permute.xlu0 %1350
        %1352 = vrot.lane.b32.xlu0 %v1167, 24
        %v1353 = vpop.permute.xlu0 %1352
        %1354 = vrot.lane.b32.xlu0 %v1168, 24
        %v1355 = vpop.permute.xlu0 %1354
        %1356 = vrot.lane.b32.xlu0 %v1169, 24
        %v1357 = vpop.permute.xlu0 %1356
        %1358 = vrot.lane.b32.xlu0 %v1170, 24
        %v1359 = vpop.permute.xlu0 %1358
        %1360 = vrot.lane.b32.xlu0 %v1171, 24
        %v1361 = vpop.permute.xlu0 %1360
        %1362 = vrot.lane.b32.xlu0 %v1172, 24
        %v1363 = vpop.permute.xlu0 %1362
        %1364 = vrot.lane.b32.xlu0 %v1173, 24
        %v1365 = vpop.permute.xlu0 %1364
        %1366 = vrot.lane.b32.xlu0 %v1174, 24
        %v1367 = vpop.permute.xlu0 %1366
        %1368 = vrot.lane.b32.xlu0 %v1175, 24
        %v1369 = vpop.permute.xlu0 %1368
        %vm1402 = vcmask 97280
        %v1403 = vsel %vm1402, %v1140, %v1209
        %v1404 = vsel %vm1402, %v1141, %v1211
        %v1405 = vsel %vm1402, %v1142, %v1213
        %v1406 = vsel %vm1402, %v1143, %v1215
        %v1407 = vsel %vm1402, %v1144, %v1217
        %v1408 = vsel %vm1402, %v1145, %v1219
        %v1409 = vsel %vm1402, %v1146, %v1221
        %v1410 = vsel %vm1402, %v1147, %v1223
        %v1411 = vsel %vm1402, %v1148, %v1225
        %v1412 = vsel %vm1402, %v1149, %v1227
        %v1413 = vsel %vm1402, %v1150, %v1229
        %v1414 = vsel %vm1402, %v1151, %v1231
        %v1415 = vsel %vm1402, %v1152, %v1233
        %v1416 = vsel %vm1402, %v1153, %v1235
        %v1417 = vsel %vm1402, %v1154, %v1237
        %v1418 = vsel %vm1402, %v1155, %v1239
        %v1419 = vsel %vm1402, %v1156, %v1241
        %v1420 = vsel %vm1402, %v1157, %v1243
        %v1421 = vsel %vm1402, %v1158, %v1245
        %v1422 = vsel %vm1402, %v1159, %v1247
        %v1423 = vsel %vm1402, %v1160, %v1249
        %v1424 = vsel %vm1402, %v1161, %v1251
        %v1425 = vsel %vm1402, %v1162, %v1253
        %v1426 = vsel %vm1402, %v1163, %v1255
        %v1427 = vsel %vm1402, %v1164, %v1257
        %v1428 = vsel %vm1402, %v1165, %v1259
        %v1429 = vsel %vm1402, %v1166, %v1261
        %v1430 = vsel %vm1402, %v1167, %v1263
        %v1431 = vsel %vm1402, %v1168, %v1265
        %v1432 = vsel %vm1402, %v1169, %v1267
        %v1433 = vsel %vm1402, %v1170, %v1269
        %v1434 = vsel %vm1402, %v1171, %v1271
        %vm1435 = vcmask 195584
        %v1436 = vsel %vm1435, %v1403, %v1307
        %v1437 = vsel %vm1435, %v1404, %v1309
        %v1438 = vsel %vm1435, %v1405, %v1311
        %v1439 = vsel %vm1435, %v1406, %v1313
        %v1440 = vsel %vm1435, %v1407, %v1315
        %v1441 = vsel %vm1435, %v1408, %v1317
        %v1442 = vsel %vm1435, %v1409, %v1319
        %v1443 = vsel %vm1435, %v1410, %v1321
        %v1444 = vsel %vm1435, %v1411, %v1323
        %v1445 = vsel %vm1435, %v1412, %v1325
        %v1446 = vsel %vm1435, %v1413, %v1327
        %v1447 = vsel %vm1435, %v1414, %v1329
        %v1448 = vsel %vm1435, %v1415, %v1331
        %v1449 = vsel %vm1435, %v1416, %v1333
        %v1450 = vsel %vm1435, %v1417, %v1335
        %v1451 = vsel %vm1435, %v1418, %v1337
        %v1452 = vsel %vm1435, %v1419, %v1339
        %v1453 = vsel %vm1435, %v1420, %v1341
        %v1454 = vsel %vm1435, %v1421, %v1343
        %v1455 = vsel %vm1435, %v1422, %v1345
        %v1456 = vsel %vm1435, %v1423, %v1347
        %v1457 = vsel %vm1435, %v1424, %v1349
        %v1458 = vsel %vm1435, %v1425, %v1351
        %v1459 = vsel %vm1435, %v1426, %v1353
        %v1460 = vsel %vm1435, %v1427, %v1355
        %v1461 = vsel %vm1435, %v1428, %v1357
        %v1462 = vsel %vm1435, %v1429, %v1359
        %v1463 = vsel %vm1435, %v1430, %v1361
        %v1464 = vsel %vm1435, %v1431, %v1363
        %v1465 = vsel %vm1435, %v1432, %v1365
        %v1466 = vsel %vm1435, %v1433, %v1367
        %v1467 = vsel %vm1435, %v1434, %v1369
        %v1468 = vld [vmem:[%s1] sm:$0xff]
        %v1469 = vld [vmem:[%s1 + $0x8] sm:$0xff]
        %v1470 = vld [vmem:[%s1 + $0x10] sm:$0xff]
        %v1471 = vld [vmem:[%s1 + $0x18] sm:$0xff]
        %v1472 = vld [vmem:[%s1 + $0x20] sm:$0xf]
        %v1473 = vld [vmem:[%s2] sm:$0x1]
        %v1475 = vlaneseq
        %v1476 = vshrl.u32 %v1475, 7
        %v1477 = vsub.s32 0, %v1476
        %v1478 = vrot.slane %v1473, %v1477
        %vm1480 = vcmask 293888
        %v1482 = vsel %vm1480, %v1436, 0
        %v1485 = vsel %vm1480, %v1437, 0
        %v1488 = vsel %vm1480, %v1438, 0
        %v1491 = vsel %vm1480, %v1439, 0
        %v1494 = vsel %vm1480, %v1440, 0
        %v1497 = vsel %vm1480, %v1441, 0
        %v1500 = vsel %vm1480, %v1442, 0
        %v1503 = vsel %vm1480, %v1443, 0
        %v1506 = vsel %vm1480, %v1444, 0
        %v1509 = vsel %vm1480, %v1445, 0
        %v1512 = vsel %vm1480, %v1446, 0
        %v1515 = vsel %vm1480, %v1447, 0
        %v1518 = vsel %vm1480, %v1448, 0
        %v1521 = vsel %vm1480, %v1449, 0
        %v1524 = vsel %vm1480, %v1450, 0
        %v1527 = vsel %vm1480, %v1451, 0
        %v1530 = vsel %vm1480, %v1452, 0
        %v1533 = vsel %vm1480, %v1453, 0
        %v1536 = vsel %vm1480, %v1454, 0
        %v1539 = vsel %vm1480, %v1455, 0
        %v1542 = vsel %vm1480, %v1456, 0
        %v1545 = vsel %vm1480, %v1457, 0
        %v1548 = vsel %vm1480, %v1458, 0
        %v1551 = vsel %vm1480, %v1459, 0
        %v1554 = vsel %vm1480, %v1460, 0
        %v1557 = vsel %vm1480, %v1461, 0
        %v1560 = vsel %vm1480, %v1462, 0
        %v1563 = vsel %vm1480, %v1463, 0
        %v1566 = vsel %vm1480, %v1464, 0
        %v1569 = vsel %vm1480, %v1465, 0
        %v1572 = vsel %vm1480, %v1466, 0
        %v1575 = vsel %vm1480, %v1467, 0
        %vm1577 = vcmask 1043456
        %v1579 = vsel %vm1577, %v1472, 0
        %1581 = vmatprep.subr.mxu0 0.0
        %1582 = vmatpush1.msra.mxu0 %v1468
        %1583 = vmatprep.subr.mxu0 0.0
        %1584 = vmatpush1.msra.mxu0 %v1469
        %1585 = vmatprep.subr.mxu0 0.0
        %1586 = vmatpush1.msra.mxu0 %v1470
        %1587 = vmatprep.subr.mxu0 0.0
        %1588 = vmatpush1.msra.mxu0 %v1471
        %1589 = vmatprep.subr.mxu0 0.0
        %1590 = vmatpush1.msra.mxu0 %v1579
        %1591 = vmatprep.subr.mxu0 0.0
        %1592 = vmatpush1.msra.mxu0 0.0
        %1593 = vmatprep.subr.mxu0 0.0
        %1594 = vmatpush1.msra.mxu0 0.0
        %1595 = vmatprep.subr.mxu0 0.0
        %1596 = vmatpush1.msra.mxu0 0.0
        %1597 = vmatprep.subr.mxu0 0.0
        %1598 = vmatpush1.msra.mxu0 0.0
        %1599 = vmatprep.subr.mxu0 0.0
        %1600 = vmatpush1.msra.mxu0 0.0
        %1601 = vmatprep.subr.mxu0 0.0
        %1602 = vmatpush1.msra.mxu0 0.0
        %1603 = vmatprep.subr.mxu0 0.0
        %1604 = vmatpush1.msra.mxu0 0.0
        %1605 = vmatprep.subr.mxu0 0.0
        %1606 = vmatpush1.msra.mxu0 0.0
        %1607 = vmatprep.subr.mxu0 0.0
        %1608 = vmatpush1.msra.mxu0 0.0
        %1609 = vmatprep.subr.mxu0 0.0
        %1610 = vmatpush1.msra.mxu0 0.0
        %1611 = vmatprep.subr.mxu0 0.0
        %1612 = vmatpush1.msra.mxu0 0.0
        %1613 = vmatprep.subr.mxu0 0.0
        %1614 = vmatpush1.msra.mxu0 0.0
        %1615 = vmatprep.subr.mxu0 0.0
        %1616 = vmatpush1.msra.mxu0 0.0
        %1617 = vmatprep.subr.mxu0 0.0
        %1618 = vmatpush1.msra.mxu0 0.0
        %1619 = vmatprep.subr.mxu0 0.0
        %1620 = vmatpush1.msra.mxu0 0.0
        %1621 = vmatprep.subr.mxu0 0.0
        %1622 = vmatpush1.msra.mxu0 0.0
        %1623 = vmatprep.subr.mxu0 0.0
        %1624 = vmatpush1.msra.mxu0 0.0
        %1625 = vmatprep.subr.mxu0 0.0
        %1626 = vmatpush1.msra.mxu0 0.0
        %1627 = vmatprep.subr.mxu0 0.0
        %1628 = vmatpush1.msra.mxu0 0.0
        %1629 = vmatprep.subr.mxu0 0.0
        %1630 = vmatpush1.msra.mxu0 0.0
        %1631 = vmatprep.subr.mxu0 0.0
        %1632 = vmatpush1.msra.mxu0 0.0
        %1633 = vmatprep.subr.mxu0 0.0
        %1634 = vmatpush1.msra.mxu0 0.0
        %1635 = vmatprep.subr.mxu0 0.0
        %1636 = vmatpush1.msra.mxu0 0.0
        %1637 = vmatprep.subr.mxu0 0.0
        %1638 = vmatpush1.msra.mxu0 0.0
        %1639 = vmatprep.subr.mxu0 0.0
        %1640 = vmatpush1.msra.mxu0 0.0
        %1641 = vmatprep.subr.mxu0 0.0
        %1642 = vmatpush1.msra.mxu0 0.0
        %1643 = vmatprep.subr.mxu0 0.0
        %1644 = vmatpush1.msra.mxu0 0.0
        %1645 = vmatprep.mubr.f32.mxu0 0.0
        %1646 = vmatmul.mubr.f32.gmra.mrb[0].mxu0 %v1482
        %v1647 = vpop.f32.mrb[0].mxu0
        %v1648 = vadd.f32 %v1478, %v1647
        %v1649 = vpop.f32.mrb[0].mxu0
        %1650 = vmatprep.mubr.f32.mxu0 0.0
        %1651 = vmatmul.mubr.f32.gmra.mrb[0].mxu0 %v1485
        %v1652 = vpop.f32.mrb[0].mxu0
        %v1653 = vadd.f32 %v1478, %v1652
        %v1654 = vpop.f32.mrb[0].mxu0
        %1655 = vmatprep.mubr.f32.mxu0 0.0
        %1656 = vmatmul.mubr.f32.gmra.mrb[0].mxu0 %v1488
        %v1657 = vpop.f32.mrb[0].mxu0
        %v1658 = vadd.f32 %v1478, %v1657
        %v1659 = vpop.f32.mrb[0].mxu0
        %1660 = vmatprep.mubr.f32.mxu0 0.0
        %1661 = vmatmul.mubr.f32.gmra.mrb[0].mxu0 %v1491
        %v1662 = vpop.f32.mrb[0].mxu0
        %v1663 = vadd.f32 %v1478, %v1662
        %v1664 = vpop.f32.mrb[0].mxu0
        %1665 = vmatprep.mubr.f32.mxu0 0.0
        %1666 = vmatmul.mubr.f32.gmra.mrb[0].mxu0 %v1494
        %v1667 = vpop.f32.mrb[0].mxu0
        %v1668 = vadd.f32 %v1478, %v1667
        %v1669 = vpop.f32.mrb[0].mxu0
        %1670 = vmatprep.mubr.f32.mxu0 0.0
        %1671 = vmatmul.mubr.f32.gmra.mrb[0].mxu0 %v1497
        %v1672 = vpop.f32.mrb[0].mxu0
        %v1673 = vadd.f32 %v1478, %v1672
        %v1674 = vpop.f32.mrb[0].mxu0
        %1675 = vmatprep.mubr.f32.mxu0 0.0
        %1676 = vmatmul.mubr.f32.gmra.mrb[0].mxu0 %v1500
        %v1677 = vpop.f32.mrb[0].mxu0
        %v1678 = vadd.f32 %v1478, %v1677
        %v1679 = vpop.f32.mrb[0].mxu0
        %1680 = vmatprep.mubr.f32.mxu0 0.0
        %1681 = vmatmul.mubr.f32.gmra.mrb[0].mxu0 %v1503
        %v1682 = vpop.f32.mrb[0].mxu0
        %v1683 = vadd.f32 %v1478, %v1682
        %v1684 = vpop.f32.mrb[0].mxu0
        %1685 = vmatprep.mubr.f32.mxu0 0.0
        %1686 = vmatmul.mubr.f32.gmra.mrb[0].mxu0 %v1506
        %v1687 = vpop.f32.mrb[0].mxu0
        %v1688 = vadd.f32 %v1478, %v1687
        %v1689 = vpop.f32.mrb[0].mxu0
        %1690 = vmatprep.mubr.f32.mxu0 0.0
        %1691 = vmatmul.mubr.f32.gmra.mrb[0].mxu0 %v1509
        %v1692 = vpop.f32.mrb[0].mxu0
        %v1693 = vadd.f32 %v1478, %v1692
        %v1694 = vpop.f32.mrb[0].mxu0
        %1695 = vmatprep.mubr.f32.mxu0 0.0
        %1696 = vmatmul.mubr.f32.gmra.mrb[0].mxu0 %v1512
        %v1697 = vpop.f32.mrb[0].mxu0
        %v1698 = vadd.f32 %v1478, %v1697
        %v1699 = vpop.f32.mrb[0].mxu0
        %1700 = vmatprep.mubr.f32.mxu0 0.0
        %1701 = vmatmul.mubr.f32.gmra.mrb[0].mxu0 %v1515
        %v1702 = vpop.f32.mrb[0].mxu0
        %v1703 = vadd.f32 %v1478, %v1702
        %v1704 = vpop.f32.mrb[0].mxu0
        %1705 = vmatprep.mubr.f32.mxu0 0.0
        %1706 = vmatmul.mubr.f32.gmra.mrb[0].mxu0 %v1518
        %v1707 = vpop.f32.mrb[0].mxu0
        %v1708 = vadd.f32 %v1478, %v1707
        %v1709 = vpop.f32.mrb[0].mxu0
        %1710 = vmatprep.mubr.f32.mxu0 0.0
        %1711 = vmatmul.mubr.f32.gmra.mrb[0].mxu0 %v1521
        %v1712 = vpop.f32.mrb[0].mxu0
        %v1713 = vadd.f32 %v1478, %v1712
        %v1714 = vpop.f32.mrb[0].mxu0
        %1715 = vmatprep.mubr.f32.mxu0 0.0
        %1716 = vmatmul.mubr.f32.gmra.mrb[0].mxu0 %v1524
        %v1717 = vpop.f32.mrb[0].mxu0
        %v1718 = vadd.f32 %v1478, %v1717
        %v1719 = vpop.f32.mrb[0].mxu0
        %1720 = vmatprep.mubr.f32.mxu0 0.0
        %1721 = vmatmul.mubr.f32.gmra.mrb[0].mxu0 %v1527
        %v1722 = vpop.f32.mrb[0].mxu0
        %v1723 = vadd.f32 %v1478, %v1722
        %v1724 = vpop.f32.mrb[0].mxu0
        %1725 = vmatprep.mubr.f32.mxu0 0.0
        %1726 = vmatmul.mubr.f32.gmra.mrb[0].mxu0 %v1530
        %v1727 = vpop.f32.mrb[0].mxu0
        %v1728 = vadd.f32 %v1478, %v1727
        %v1729 = vpop.f32.mrb[0].mxu0
        %1730 = vmatprep.mubr.f32.mxu0 0.0
        %1731 = vmatmul.mubr.f32.gmra.mrb[0].mxu0 %v1533
        %v1732 = vpop.f32.mrb[0].mxu0
        %v1733 = vadd.f32 %v1478, %v1732
        %v1734 = vpop.f32.mrb[0].mxu0
        %1735 = vmatprep.mubr.f32.mxu0 0.0
        %1736 = vmatmul.mubr.f32.gmra.mrb[0].mxu0 %v1536
        %v1737 = vpop.f32.mrb[0].mxu0
        %v1738 = vadd.f32 %v1478, %v1737
        %v1739 = vpop.f32.mrb[0].mxu0
        %1740 = vmatprep.mubr.f32.mxu0 0.0
        %1741 = vmatmul.mubr.f32.gmra.mrb[0].mxu0 %v1539
        %v1742 = vpop.f32.mrb[0].mxu0
        %v1743 = vadd.f32 %v1478, %v1742
        %v1744 = vpop.f32.mrb[0].mxu0
        %1745 = vmatprep.mubr.f32.mxu0 0.0
        %1746 = vmatmul.mubr.f32.gmra.mrb[0].mxu0 %v1542
        %v1747 = vpop.f32.mrb[0].mxu0
        %v1748 = vadd.f32 %v1478, %v1747
        %v1749 = vpop.f32.mrb[0].mxu0
        %1750 = vmatprep.mubr.f32.mxu0 0.0
        %1751 = vmatmul.mubr.f32.gmra.mrb[0].mxu0 %v1545
        %v1752 = vpop.f32.mrb[0].mxu0
        %v1753 = vadd.f32 %v1478, %v1752
        %v1754 = vpop.f32.mrb[0].mxu0
        %1755 = vmatprep.mubr.f32.mxu0 0.0
        %1756 = vmatmul.mubr.f32.gmra.mrb[0].mxu0 %v1548
        %v1757 = vpop.f32.mrb[0].mxu0
        %v1758 = vadd.f32 %v1478, %v1757
        %v1759 = vpop.f32.mrb[0].mxu0
        %1760 = vmatprep.mubr.f32.mxu0 0.0
        %1761 = vmatmul.mubr.f32.gmra.mrb[0].mxu0 %v1551
        %v1762 = vpop.f32.mrb[0].mxu0
        %v1763 = vadd.f32 %v1478, %v1762
        %v1764 = vpop.f32.mrb[0].mxu0
        %1765 = vmatprep.mubr.f32.mxu0 0.0
        %1766 = vmatmul.mubr.f32.gmra.mrb[0].mxu0 %v1554
        %v1767 = vpop.f32.mrb[0].mxu0
        %v1768 = vadd.f32 %v1478, %v1767
        %v1769 = vpop.f32.mrb[0].mxu0
        %1770 = vmatprep.mubr.f32.mxu0 0.0
        %1771 = vmatmul.mubr.f32.gmra.mrb[0].mxu0 %v1557
        %v1772 = vpop.f32.mrb[0].mxu0
        %v1773 = vadd.f32 %v1478, %v1772
        %v1774 = vpop.f32.mrb[0].mxu0
        %1775 = vmatprep.mubr.f32.mxu0 0.0
        %1776 = vmatmul.mubr.f32.gmra.mrb[0].mxu0 %v1560
        %v1777 = vpop.f32.mrb[0].mxu0
        %v1778 = vadd.f32 %v1478, %v1777
        %v1779 = vpop.f32.mrb[0].mxu0
        %1780 = vmatprep.mubr.f32.mxu0 0.0
        %1781 = vmatmul.mubr.f32.gmra.mrb[0].mxu0 %v1563
        %v1782 = vpop.f32.mrb[0].mxu0
        %v1783 = vadd.f32 %v1478, %v1782
        %v1784 = vpop.f32.mrb[0].mxu0
        %1785 = vmatprep.mubr.f32.mxu0 0.0
        %1786 = vmatmul.mubr.f32.gmra.mrb[0].mxu0 %v1566
        %v1787 = vpop.f32.mrb[0].mxu0
        %v1788 = vadd.f32 %v1478, %v1787
        %v1789 = vpop.f32.mrb[0].mxu0
        %1790 = vmatprep.mubr.f32.mxu0 0.0
        %1791 = vmatmul.mubr.f32.gmra.mrb[0].mxu0 %v1569
        %v1792 = vpop.f32.mrb[0].mxu0
        %v1793 = vadd.f32 %v1478, %v1792
        %v1794 = vpop.f32.mrb[0].mxu0
        %1795 = vmatprep.mubr.f32.mxu0 0.0
        %1796 = vmatmul.mubr.f32.gmra.mrb[0].mxu0 %v1572
        %v1797 = vpop.f32.mrb[0].mxu0
        %v1798 = vadd.f32 %v1478, %v1797
        %v1799 = vpop.f32.mrb[0].mxu0
        %1800 = vmatprep.mubr.f32.mxu0 0.0
        %1801 = vmatmul.mubr.f32.gmra.mrb[0].mxu0 %v1575
        %v1802 = vpop.f32.mrb[0].mxu0
        %v1803 = vadd.f32 %v1478, %v1802
        %v1804 = vpop.f32.mrb[0].mxu0
        %1805 = vdwg.mxu0
        %v1806 = vmax.f32 %v1648, 0.0
        %v1807 = vmax.f32 %v1653, 0.0
        %v1808 = vmax.f32 %v1658, 0.0
        %v1809 = vmax.f32 %v1663, 0.0
        %v1810 = vmax.f32 %v1668, 0.0
        %v1811 = vmax.f32 %v1673, 0.0
        %v1812 = vmax.f32 %v1678, 0.0
        %v1813 = vmax.f32 %v1683, 0.0
        %v1814 = vmax.f32 %v1688, 0.0
        %v1815 = vmax.f32 %v1693, 0.0
        %v1816 = vmax.f32 %v1698, 0.0
        %v1817 = vmax.f32 %v1703, 0.0
        %v1818 = vmax.f32 %v1708, 0.0
        %v1819 = vmax.f32 %v1713, 0.0
        %v1820 = vmax.f32 %v1718, 0.0
        %v1821 = vmax.f32 %v1723, 0.0
        %v1822 = vmax.f32 %v1728, 0.0
        %v1823 = vmax.f32 %v1733, 0.0
        %v1824 = vmax.f32 %v1738, 0.0
        %v1825 = vmax.f32 %v1743, 0.0
        %v1826 = vmax.f32 %v1748, 0.0
        %v1827 = vmax.f32 %v1753, 0.0
        %v1828 = vmax.f32 %v1758, 0.0
        %v1829 = vmax.f32 %v1763, 0.0
        %v1830 = vmax.f32 %v1768, 0.0
        %v1831 = vmax.f32 %v1773, 0.0
        %v1832 = vmax.f32 %v1778, 0.0
        %v1833 = vmax.f32 %v1783, 0.0
        %v1834 = vmax.f32 %v1788, 0.0
        %v1835 = vmax.f32 %v1793, 0.0
        %v1836 = vmax.f32 %v1798, 0.0
        %v1837 = vmax.f32 %v1803, 0.0
        %v1838 = vld [vmem:[%s3] sm:$0xff]
        %v1839 = vld [vmem:[%s3 + $0x8] sm:$0xff]
        %v1840 = vld [vmem:[%s3 + $0x10] sm:$0xff]
        %v1841 = vld [vmem:[%s3 + $0x18] sm:$0xff]
        %1842 = vmatprep.subr.mxu0 0.0
        %1843 = vmatpush1.msra.mxu0 %v1806
        %1844 = vmatprep.subr.mxu0 0.0
        %1845 = vmatpush1.msra.mxu0 %v1807
        %1846 = vmatprep.subr.mxu0 0.0
        %1847 = vmatpush1.msra.mxu0 %v1808
        %1848 = vmatprep.subr.mxu0 0.0
        %1849 = vmatpush1.msra.mxu0 %v1809
        %1850 = vmatprep.subr.mxu0 0.0
        %1851 = vmatpush1.msra.mxu0 %v1810
        %1852 = vmatprep.subr.mxu0 0.0
        %1853 = vmatpush1.msra.mxu0 %v1811
        %1854 = vmatprep.subr.mxu0 0.0
        %1855 = vmatpush1.msra.mxu0 %v1812
        %1856 = vmatprep.subr.mxu0 0.0
        %1857 = vmatpush1.msra.mxu0 %v1813
        %1858 = vmatprep.subr.mxu0 0.0
        %1859 = vmatpush1.msra.mxu0 %v1814
        %1860 = vmatprep.subr.mxu0 0.0
        %1861 = vmatpush1.msra.mxu0 %v1815
        %1862 = vmatprep.subr.mxu0 0.0
        %1863 = vmatpush1.msra.mxu0 %v1816
        %1864 = vmatprep.subr.mxu0 0.0
        %1865 = vmatpush1.msra.mxu0 %v1817
        %1866 = vmatprep.subr.mxu0 0.0
        %1867 = vmatpush1.msra.mxu0 %v1818
        %1868 = vmatprep.subr.mxu0 0.0
        %1869 = vmatpush1.msra.mxu0 %v1819
        %1870 = vmatprep.subr.mxu0 0.0
        %1871 = vmatpush1.msra.mxu0 %v1820
        %1872 = vmatprep.subr.mxu0 0.0
        %1873 = vmatpush1.msra.mxu0 %v1821
        %1874 = vmatprep.subr.mxu0 0.0
        %1875 = vmatpush1.msra.mxu0 %v1822
        %1876 = vmatprep.subr.mxu0 0.0
        %1877 = vmatpush1.msra.mxu0 %v1823
        %1878 = vmatprep.subr.mxu0 0.0
        %1879 = vmatpush1.msra.mxu0 %v1824
        %1880 = vmatprep.subr.mxu0 0.0
        %1881 = vmatpush1.msra.mxu0 %v1825
        %1882 = vmatprep.subr.mxu0 0.0
        %1883 = vmatpush1.msra.mxu0 %v1826
        %1884 = vmatprep.subr.mxu0 0.0
        %1885 = vmatpush1.msra.mxu0 %v1827
        %1886 = vmatprep.subr.mxu0 0.0
        %1887 = vmatpush1.msra.mxu0 %v1828
        %1888 = vmatprep.subr.mxu0 0.0
        %1889 = vmatpush1.msra.mxu0 %v1829
        %1890 = vmatprep.subr.mxu0 0.0
        %1891 = vmatpush1.msra.mxu0 %v1830
        %1892 = vmatprep.subr.mxu0 0.0
        %1893 = vmatpush1.msra.mxu0 %v1831
        %1894 = vmatprep.subr.mxu0 0.0
        %1895 = vmatpush1.msra.mxu0 %v1832
        %1896 = vmatprep.subr.mxu0 0.0
        %1897 = vmatpush1.msra.mxu0 %v1833
        %1898 = vmatprep.subr.mxu0 0.0
        %1899 = vmatpush1.msra.mxu0 %v1834
        %1900 = vmatprep.subr.mxu0 0.0
        %1901 = vmatpush1.msra.mxu0 %v1835
        %1902 = vmatprep.subr.mxu0 0.0
        %1903 = vmatpush1.msra.mxu0 %v1836
        %1904 = vmatprep.subr.mxu0 0.0
        %1905 = vmatpush1.msra.mxu0 %v1837
        %1906 = vmatprep.mubr.f32.mxu0 %v1839
        %1907 = vmatmul.mubr.f32.gmra.mrb[0].mxu0 %v1838
        %v1908 = vpop.f32.mrb[0].mxu0
        %v1909 = vadd.f32 0.0, %v1908
        %v1910 = vpop.f32.mrb[0].mxu0
        %1911 = vmatprep.mubr.f32.mxu0 %v1841
        %1912 = vmatmul.mubr.f32.gmra.mrb[0].mxu0 %v1840
        %v1913 = vpop.f32.mrb[0].mxu0
        %v1914 = vadd.f32 0.0, %v1913
        %v1915 = vpop.f32.mrb[0].mxu0
        %1916 = vdwg.mxu0
        %v1917 = vld [vmem:[%s4] sm:$0xff]
        %v1918 = vld [vmem:[%s4 + $0x8] sm:$0xff]
        %v1919 = vld [vmem:[%s4 + $0x10] sm:$0xff]
        %v1920 = vld [vmem:[%s4 + $0x18] sm:$0xff]
        %v1921 = vld [vmem:[%s5] sm:$0x1]
        %v1923 = vlaneseq
        %v1924 = vshrl.u32 %v1923, 7
        %v1925 = vsub.s32 0, %v1924
        %v1926 = vrot.slane %v1921, %v1925
        %vm1928 = vcmask 261120
        %v1930 = vsel %vm1928, %v1909, 0
        %v1933 = vsel %vm1928, %v1914, 0
        %1935 = vmatprep.subr.mxu0 0.0
        %1936 = vmatpush1.msra.mxu0 %v1917
        %1937 = vmatprep.subr.mxu0 0.0
        %1938 = vmatpush1.msra.mxu0 %v1918
        %1939 = vmatprep.subr.mxu0 0.0
        %1940 = vmatpush1.msra.mxu0 %v1919
        %1941 = vmatprep.subr.mxu0 0.0
        %1942 = vmatpush1.msra.mxu0 %v1920
        %1943 = vmatprep.subr.mxu0 0.0
        %1944 = vmatpush1.msra.mxu0 0.0
        %1945 = vmatprep.subr.mxu0 0.0
        %1946 = vmatpush1.msra.mxu0 0.0
        %1947 = vmatprep.subr.mxu0 0.0
        %1948 = vmatpush1.msra.mxu0 0.0
        %1949 = vmatprep.subr.mxu0 0.0
        %1950 = vmatpush1.msra.mxu0 0.0
        %1951 = vmatprep.subr.mxu0 0.0
        %1952 = vmatpush1.msra.mxu0 0.0
        %1953 = vmatprep.subr.mxu0 0.0
        %1954 = vmatpush1.msra.mxu0 0.0
        %1955 = vmatprep.subr.mxu0 0.0
        %1956 = vmatpush1.msra.mxu0 0.0
        %1957 = vmatprep.subr.mxu0 0.0
        %1958 = vmatpush1.msra.mxu0 0.0
        %1959 = vmatprep.subr.mxu0 0.0
        %1960 = vmatpush1.msra.mxu0 0.0
        %1961 = vmatprep.subr.mxu0 0.0
        %1962 = vmatpush1.msra.mxu0 0.0
        %1963 = vmatprep.subr.mxu0 0.0
        %1964 = vmatpush1.msra.mxu0 0.0
        %1965 = vmatprep.subr.mxu0 0.0
        %1966 = vmatpush1.msra.mxu0 0.0
        %1967 = vmatprep.subr.mxu0 0.0
        %1968 = vmatpush1.msra.mxu0 0.0
        %1969 = vmatprep.subr.mxu0 0.0
        %1970 = vmatpush1.msra.mxu0 0.0
        %1971 = vmatprep.subr.mxu0 0.0
        %1972 = vmatpush1.msra.mxu0 0.0
        %1973 = vmatprep.subr.mxu0 0.0
        %1974 = vmatpush1.msra.mxu0 0.0
        %1975 = vmatprep.subr.mxu0 0.0
        %1976 = vmatpush1.msra.mxu0 0.0
        %1977 = vmatprep.subr.mxu0 0.0
        %1978 = vmatpush1.msra.mxu0 0.0
        %1979 = vmatprep.subr.mxu0 0.0
        %1980 = vmatpush1.msra.mxu0 0.0
        %1981 = vmatprep.subr.mxu0 0.0
        %1982 = vmatpush1.msra.mxu0 0.0
        %1983 = vmatprep.subr.mxu0 0.0
        %1984 = vmatpush1.msra.mxu0 0.0
        %1985 = vmatprep.subr.mxu0 0.0
        %1986 = vmatpush1.msra.mxu0 0.0
        %1987 = vmatprep.subr.mxu0 0.0
        %1988 = vmatpush1.msra.mxu0 0.0
        %1989 = vmatprep.subr.mxu0 0.0
        %1990 = vmatpush1.msra.mxu0 0.0
        %1991 = vmatprep.subr.mxu0 0.0
        %1992 = vmatpush1.msra.mxu0 0.0
        %1993 = vmatprep.subr.mxu0 0.0
        %1994 = vmatpush1.msra.mxu0 0.0
        %1995 = vmatprep.subr.mxu0 0.0
        %1996 = vmatpush1.msra.mxu0 0.0
        %1997 = vmatprep.subr.mxu0 0.0
        %1998 = vmatpush1.msra.mxu0 0.0
        %1999 = vmatprep.mubr.f32.mxu0 0.0
        %2000 = vmatmul.mubr.f32.gmra.mrb[0].mxu0 %v1930
        %v2001 = vpop.f32.mrb[0].mxu0
        %v2002 = vadd.f32 %v1926, %v2001
        %v2003 = vpop.f32.mrb[0].mxu0
        %2004 = vmatprep.mubr.f32.mxu0 0.0
        %2005 = vmatmul.mubr.f32.gmra.mrb[0].mxu0 %v1933
        %v2006 = vpop.f32.mrb[0].mxu0
        %v2007 = vadd.f32 %v1926, %v2006
        %v2008 = vpop.f32.mrb[0].mxu0
        %2009 = vdwg.mxu0
        %2010 = vst [vmem:[%s244] sm:$0xff] %v2002
        %2011 = vst [vmem:[%s244 + $0x8] sm:$0xff] %v2007
        %s2012 = sand.u32 %s159, 1
        %s2013 = scalar_lea.sflag [#allocation3], %s2012
        %s2014 = sand.u32 %s159, 1
        %s2015 = smul.addr %s2014, 16
        %s2016 = scalar_lea.vmem [#allocation2], %s2015
        // Predicated region
        $region45: #{tpu_custom_call.1} parent=43 // pred_check
          %p2017 = pneg %p169
        $region46: #{tpu_custom_call.1} parent=43 // pred_check_branch
          %2019 = sbr.rel (%p2017) target = $region48
        $region47: #{tpu_custom_call.1} parent=43 // pred_region
          %s2021 = ssub.s32 256, 256
          %2022 = vsyncadd %s2013, %s2021
          %s2023 = smul.addr %s20, 2
          %s2024 = smul.addr %s2023, 128
          %s2025 = scalar_lea.hbm %s6, %s2024
          %s2026 = sshll.u32 %s2016, 4
          %s2027 = int_to_ptr.vmem [resolvable:$true] %s2026
          %2032 = dma.vmem_to_hbm [thread:$0]  %s2027, 256, %s2025, %s2013, 128, 128, 8
        $region48: #{tpu_custom_call.1} parent=43 // pred_fallthru
          _
      $region44: #{tpu_custom_call.1} parent=5 // pred_fallthru
        _
      %p2033 = scmp.le.s32.totalorder 2, %s15
      // Predicated region
      $region49: #{tpu_custom_call.1} parent=5 // pred_check
        %p2034 = pneg %p2033
      $region50: #{tpu_custom_call.1} parent=5 // pred_check_branch
        %2036 = sbr.rel (%p2034) target = $region52
      $region51: #{tpu_custom_call.1} parent=5 // pred_region
        %s2037 = ssub.s32 %s15, 2
        // Predicated region
        $region53: #{tpu_custom_call.1} parent=51 // pred_check
          %p2038 = pneg %p175
        $region54: #{tpu_custom_call.1} parent=51 // pred_check_branch
          %2040 = sbr.rel (%p2038) target = $region56
        $region55: #{tpu_custom_call.1} parent=51 // pred_region
          %s2041 = sand.u32 %s160, 1
          %s2042 = scalar_lea.sflag [#allocation3], %s2041
          %s2043 = sand.u32 %s160, 1
          %s2044 = smul.addr %s2043, 16
          %s2045 = scalar_lea.vmem [#allocation2], %s2044
          %2046 = dma.done %s2042, 256
        $region56: #{tpu_custom_call.1} parent=51 // pred_fallthru
          _
      $region52: #{tpu_custom_call.1} parent=5 // pred_fallthru
        _
    $region6: #{tpu_custom_call.1} parent=1 // loop_footer
      %s19 = sadd.s32 1, %s15
    $region7: #{tpu_custom_call.1} parent=1 // loop_footer_branch
      %14 = sbr.rel target = $region3
    $region8: #{tpu_custom_call.1} parent=1 // loop_exit
      _
    %2047 = vsyncpa [#allocation3], 1
    %s2048 = scalar_lea.sflag [#allocation3], 1
    %2049 = vsyncpa %s2048, 1

</llo_original>
